<compile_context>
chip_gen: v5e
topology: v5e:2x2
jax: 0.10.0
libtpu: 0.0.40
codegen_flags: <defaults>
</compile_context>

<pallas_src>
import jax
import jax.numpy as jnp
from jax.experimental import pallas as pl
from jax.experimental.pallas import tpu as pltpu

NOISE_DIM = 100
NOISE_PAD = 128          # pad the contraction dim to the 128-lane vreg width
H1 = 256
H2 = 512
IMG_DIM = 32 * 32        # 1024


def _round_up(x, m):
    return ((x + m - 1) // m) * m


def _default_batch_tile():
    # 256 fills the 256-wide MXU on v6e/v7x; 128 matches v5e's 128-wide MXU.
    try:
        kind = jax.devices()[0].device_kind.lower()
        if "v5" in kind:
            return 128
    except Exception:
        pass
    return 256


def generator_kernel(z_ref, w1_ref, b1_ref, w2_ref, b2_ref, w3_ref, b3_ref, o_ref):
    # One batch tile per grid step. Weights/biases have constant index_maps so
    # they are fetched once and stay resident in VMEM. Activations are cast to
    # bf16 in front of each dot (native MXU path); accumulation is f32.
    z = z_ref[...].astype(jnp.bfloat16)

    h1 = jnp.dot(z, w1_ref[...], preferred_element_type=jnp.float32) + b1_ref[...]
    h1 = jnp.maximum(h1, 0.0).astype(jnp.bfloat16)          # ReLU

    h2 = jnp.dot(h1, w2_ref[...], preferred_element_type=jnp.float32) + b2_ref[...]
    h2 = jnp.maximum(h2, 0.0).astype(jnp.bfloat16)          # ReLU

    h3 = jnp.dot(h2, w3_ref[...], preferred_element_type=jnp.float32) + b3_ref[...]
    o_ref[...] = jnp.tanh(h3).astype(o_ref.dtype)           # Tanh


def generator_forward(z, params, *, tm=None):
    """z: (B, NOISE_DIM) float32 -> (B, 1, 32, 32) float32."""
    w1, b1, w2, b2, w3, b3 = params
    B = z.shape[0]

    if tm is None:
        tm = _default_batch_tile()
    # Don't use an oversized tile at tiny batch sizes; keep sublane multiple of 8.
    tm = min(tm, _round_up(max(B, 1), 8))
    b_pad = _round_up(B, tm)

    # One-time layout prep outside the kernel: pad the 100-wide noise dim to
    # 128 lanes (zeros -> math unchanged) and cast weights to bf16.
    z_p = jnp.zeros((b_pad, NOISE_PAD), jnp.float32).at[:B, :NOISE_DIM].set(z)
    w1_p = jnp.zeros((NOISE_PAD, H1), jnp.float32).at[:NOISE_DIM, :].set(w1)
    w1_b = w1_p.astype(jnp.bfloat16)
    w2_b = w2.astype(jnp.bfloat16)
    w3_b = w3.astype(jnp.bfloat16)

    const = lambda i: (0, 0)   # weights/biases: same block every grid step

    flat = pl.pallas_call(
        generator_kernel,
        out_shape=jax.ShapeDtypeStruct((b_pad, IMG_DIM), jnp.float32),
        grid_spec=pltpu.PrefetchScalarGridSpec(
            num_scalar_prefetch=0,
            grid=(b_pad // tm,),
            in_specs=[
                pl.BlockSpec((tm, NOISE_PAD), lambda i: (i, 0)),   # z tile
                pl.BlockSpec((NOISE_PAD, H1), const),              # w1
                pl.BlockSpec((1, H1), const),                      # b1
                pl.BlockSpec((H1, H2), const),                     # w2
                pl.BlockSpec((1, H2), const),                      # b2
                pl.BlockSpec((H2, IMG_DIM), const),                # w3
                pl.BlockSpec((1, IMG_DIM), const),                 # b3
            ],
            out_specs=pl.BlockSpec((tm, IMG_DIM), lambda i: (i, 0)),
        ),
        compiler_params=pltpu.CompilerParams(
            dimension_semantics=("parallel",),
        ),
    )(z_p, w1_b, b1, w2_b, b2, w3_b, b3)

    # Matches PyTorch's .view(-1, 1, 32, 32) on the NCHW output.
    return flat[:B].reshape(B, 1, 32, 32)


def init_params(key):
    """Deterministic init mimicking nn.Linear's U(-1/sqrt(fan_in), 1/sqrt(fan_in))."""
    ks = jax.random.split(key, 6)

    def lin(kw, kb, fan_in, fan_out):
        bound = 1.0 / jnp.sqrt(jnp.float32(fan_in))
        w = jax.random.uniform(kw, (fan_in, fan_out), jnp.float32, -bound, bound)
        b = jax.random.uniform(kb, (1, fan_out), jnp.float32, -bound, bound)
        return w, b

    w1, b1 = lin(ks[0], ks[1], NOISE_DIM, H1)
    w2, b2 = lin(ks[2], ks[3], H1, H2)
    w3, b3 = lin(ks[4], ks[5], H2, IMG_DIM)
    return (w1, b1, w2, b2, w3, b3)


if __name__ == "__main__":
    key = jax.random.PRNGKey(0)
    k_param, k_z = jax.random.split(key)

    params = init_params(k_param)
    batch = 2
    z = jax.random.normal(k_z, (batch, NOISE_DIM), dtype=jnp.float32)

    out = generator_forward(z, params)
    jax.block_until_ready(out)

    assert out.shape == (batch, 1, 32, 32), out.shape
    assert out.dtype == jnp.float32
    # tanh output must lie in [-1, 1]
    assert bool(jnp.all(jnp.abs(out) <= 1.0 + 1e-6))

    # Cross-check against a pure-JAX reference of the *same* math
    # (bf16 operands into each dot, f32 accumulation).
    w1, b1, w2, b2, w3, b3 = params
    w1b = w1.astype(jnp.bfloat16)
    w2b = w2.astype(jnp.bfloat16)
    w3b = w3.astype(jnp.bfloat16)
    zb = z.astype(jnp.bfloat16)
    h1 = jnp.maximum(jnp.dot(zb, w1b, preferred_element_type=jnp.float32) + b1, 0.0)
    h2 = jnp.maximum(
        jnp.dot(h1.astype(jnp.bfloat16), w2b, preferred_element_type=jnp.float32) + b2,
        0.0,
    )
    ref = jnp.tanh(
        jnp.dot(h2.astype(jnp.bfloat16), w3b, preferred_element_type=jnp.float32) + b3
    ).reshape(batch, 1, 32, 32)
    assert bool(jnp.allclose(out, ref, atol=2e-2, rtol=0.0)), float(
        jnp.max(jnp.abs(out - ref))
    )

    print("KERNEL_OK")
</pallas_src>

<mosaic_0001>
module attributes {stable_mosaic.version = 11 : i64} {
  func.func @generator_kernel(%arg0: i32, %arg1: memref<8x128xf32, #tpu.memory_space<vmem>>, %arg2: memref<128x256xbf16, #tpu.memory_space<vmem>>, %arg3: memref<1x256xf32, #tpu.memory_space<vmem>>, %arg4: memref<256x512xbf16, #tpu.memory_space<vmem>>, %arg5: memref<1x512xf32, #tpu.memory_space<vmem>>, %arg6: memref<512x1024xbf16, #tpu.memory_space<vmem>>, %arg7: memref<1x1024xf32, #tpu.memory_space<vmem>>, %arg8: memref<8x1024xf32, #tpu.memory_space<vmem>>) attributes {dimension_semantics = [#tpu.dimension_semantics<parallel>], iteration_bounds = array<i64: 1>, scalar_prefetch = 0 : i64, scratch_operands = 0 : i64, tpu.core_type = #tpu.core_type<tc>, window_params = [{transform_indices = @transform_0, window_bounds = array<i64: 8, 128>}, {pipeline_mode = #tpu.pipeline_mode<synchronous>, transform_indices = @transform_1, window_bounds = array<i64: 128, 256>}, {pipeline_mode = #tpu.pipeline_mode<synchronous>, transform_indices = @transform_2, window_bounds = array<i64: 1, 256>}, {pipeline_mode = #tpu.pipeline_mode<synchronous>, transform_indices = @transform_3, window_bounds = array<i64: 256, 512>}, {pipeline_mode = #tpu.pipeline_mode<synchronous>, transform_indices = @transform_4, window_bounds = array<i64: 1, 512>}, {pipeline_mode = #tpu.pipeline_mode<synchronous>, transform_indices = @transform_5, window_bounds = array<i64: 512, 1024>}, {pipeline_mode = #tpu.pipeline_mode<synchronous>, transform_indices = @transform_6, window_bounds = array<i64: 1, 1024>}, {transform_indices = @transform_7, window_bounds = array<i64: 8, 1024>}]} {
    %c0 = arith.constant 0 : index
    %c0_0 = arith.constant 0 : index
    %0 = vector.load %arg1[%c0, %c0_0] : memref<8x128xf32, #tpu.memory_space<vmem>>, vector<8x128xf32>
    %1 = arith.truncf %0 : vector<8x128xf32> to vector<8x128xbf16>
    %c0_1 = arith.constant 0 : index
    %c0_2 = arith.constant 0 : index
    %2 = vector.load %arg2[%c0_1, %c0_2] : memref<128x256xbf16, #tpu.memory_space<vmem>>, vector<128x256xbf16>
    %cst = arith.constant dense<0.000000e+00> : vector<8x256xf32>
    %3 = tpu.matmul %1, %2, %cst {dimension_numbers = #tpu.dot_dimension_numbers<[1], [0], [0], [1], [0, 0, 1, 1], [], []>} : vector<8x128xbf16>, vector<128x256xbf16>, vector<8x256xf32> -> vector<8x256xf32>
    %c0_3 = arith.constant 0 : index
    %c0_4 = arith.constant 0 : index
    %4 = vector.load %arg3[%c0_3, %c0_4] : memref<1x256xf32, #tpu.memory_space<vmem>>, vector<1x256xf32>
    %5 = vector.broadcast %4 : vector<1x256xf32> to vector<8x256xf32>
    %6 = arith.addf %3, %5 : vector<8x256xf32>
    %cst_5 = arith.constant 0.000000e+00 : f32
    %7 = vector.broadcast %cst_5 : f32 to vector<8x256xf32>
    %8 = arith.maximumf %6, %7 : vector<8x256xf32>
    %9 = arith.truncf %8 : vector<8x256xf32> to vector<8x256xbf16>
    %c0_6 = arith.constant 0 : index
    %c0_7 = arith.constant 0 : index
    %10 = vector.load %arg4[%c0_6, %c0_7] : memref<256x512xbf16, #tpu.memory_space<vmem>>, vector<256x512xbf16>
    %cst_8 = arith.constant dense<0.000000e+00> : vector<8x512xf32>
    %11 = tpu.matmul %9, %10, %cst_8 {dimension_numbers = #tpu.dot_dimension_numbers<[1], [0], [0], [1], [0, 0, 1, 1], [], []>} : vector<8x256xbf16>, vector<256x512xbf16>, vector<8x512xf32> -> vector<8x512xf32>
    %c0_9 = arith.constant 0 : index
    %c0_10 = arith.constant 0 : index
    %12 = vector.load %arg5[%c0_9, %c0_10] : memref<1x512xf32, #tpu.memory_space<vmem>>, vector<1x512xf32>
    %13 = vector.broadcast %12 : vector<1x512xf32> to vector<8x512xf32>
    %14 = arith.addf %11, %13 : vector<8x512xf32>
    %cst_11 = arith.constant 0.000000e+00 : f32
    %15 = vector.broadcast %cst_11 : f32 to vector<8x512xf32>
    %16 = arith.maximumf %14, %15 : vector<8x512xf32>
    %17 = arith.truncf %16 : vector<8x512xf32> to vector<8x512xbf16>
    %c0_12 = arith.constant 0 : index
    %c0_13 = arith.constant 0 : index
    %18 = vector.load %arg6[%c0_12, %c0_13] : memref<512x1024xbf16, #tpu.memory_space<vmem>>, vector<512x1024xbf16>
    %cst_14 = arith.constant dense<0.000000e+00> : vector<8x1024xf32>
    %19 = tpu.matmul %17, %18, %cst_14 {dimension_numbers = #tpu.dot_dimension_numbers<[1], [0], [0], [1], [0, 0, 1, 1], [], []>} : vector<8x512xbf16>, vector<512x1024xbf16>, vector<8x1024xf32> -> vector<8x1024xf32>
    %c0_15 = arith.constant 0 : index
    %c0_16 = arith.constant 0 : index
    %20 = vector.load %arg7[%c0_15, %c0_16] : memref<1x1024xf32, #tpu.memory_space<vmem>>, vector<1x1024xf32>
    %21 = vector.broadcast %20 : vector<1x1024xf32> to vector<8x1024xf32>
    %22 = arith.addf %19, %21 : vector<8x1024xf32>
    %23 = math.tanh %22 : vector<8x1024xf32>
    %c0_17 = arith.constant 0 : index
    %c0_18 = arith.constant 0 : index
    %24 = vector.load %arg8[%c0_17, %c0_18] : memref<8x1024xf32, #tpu.memory_space<vmem>>, vector<8x1024xf32>
    tpu.vector_store %arg8[%c0_17, %c0_18], %23 {strides = array<i32>} : memref<8x1024xf32, #tpu.memory_space<vmem>>, vector<8x1024xf32>,
    return
  }
  func.func @transform_0(%arg0: i32) -> (i32, i32) {
    %c0_i32 = arith.constant 0 : i32
    %c0_i32_0 = arith.constant 0 : i32
    return %arg0, %c0_i32 : i32, i32
  }
  func.func @transform_1(%arg0: i32) -> (i32, i32) {
    %c0_i32 = arith.constant 0 : i32
    %c0_i32_0 = arith.constant 0 : i32
    %c0_i32_1 = arith.constant 0 : i32
    return %c0_i32, %c0_i32_0 : i32, i32
  }
  func.func @transform_2(%arg0: i32) -> (i32, i32) {
    %c0_i32 = arith.constant 0 : i32
    %c0_i32_0 = arith.constant 0 : i32
    %c0_i32_1 = arith.constant 0 : i32
    return %c0_i32, %c0_i32_0 : i32, i32
  }
  func.func @transform_3(%arg0: i32) -> (i32, i32) {
    %c0_i32 = arith.constant 0 : i32
    %c0_i32_0 = arith.constant 0 : i32
    %c0_i32_1 = arith.constant 0 : i32
    return %c0_i32, %c0_i32_0 : i32, i32
  }
  func.func @transform_4(%arg0: i32) -> (i32, i32) {
    %c0_i32 = arith.constant 0 : i32
    %c0_i32_0 = arith.constant 0 : i32
    %c0_i32_1 = arith.constant 0 : i32
    return %c0_i32, %c0_i32_0 : i32, i32
  }
  func.func @transform_5(%arg0: i32) -> (i32, i32) {
    %c0_i32 = arith.constant 0 : i32
    %c0_i32_0 = arith.constant 0 : i32
    %c0_i32_1 = arith.constant 0 : i32
    return %c0_i32, %c0_i32_0 : i32, i32
  }
  func.func @transform_6(%arg0: i32) -> (i32, i32) {
    %c0_i32 = arith.constant 0 : i32
    %c0_i32_0 = arith.constant 0 : i32
    %c0_i32_1 = arith.constant 0 : i32
    return %c0_i32, %c0_i32_0 : i32, i32
  }
  func.func @transform_7(%arg0: i32) -> (i32, i32) {
    %c0_i32 = arith.constant 0 : i32
    %c0_i32_0 = arith.constant 0 : i32
    return %arg0, %c0_i32 : i32, i32
  }
}

</mosaic_0001>

<llo_original>
// kernel: tpu_custom_call.1
$region0: #{tpu_custom_call.1}
  #allocation0 [shape = 'u32[]', space=smem, size = 0x4, offset = 0x4, fixed_abs, tag = 'smem constant byte address 0x4 - core index']
  #allocation1 [shape = 'u32[72,128]{1,0:T(1,128)}', space=vmem, size = 0x9000, scoped, tag = 'internal scratch']
  %s0 = inlined_call_operand.hbm [shape: f32[8,128], index: 0, kind: input, shape index: {}]
  %s1 = inlined_call_operand.hbm [shape: bf16[128,256], index: 1, kind: input, shape index: {}]
  %s2 = inlined_call_operand.hbm [shape: f32[1,256], index: 2, kind: input, shape index: {}]
  %s3 = inlined_call_operand.hbm [shape: bf16[256,512], index: 3, kind: input, shape index: {}]
  %s4 = inlined_call_operand.hbm [shape: f32[1,512], index: 4, kind: input, shape index: {}]
  %s5 = inlined_call_operand.hbm [shape: bf16[512,1024], index: 5, kind: input, shape index: {}]
  %s6 = inlined_call_operand.hbm [shape: f32[1,1024], index: 6, kind: input, shape index: {}]
  %s7 = inlined_call_operand.hbm [shape: f32[8,1024], index: 7, kind: output, shape index: {}]
  %s8 = sld [smem:[#allocation0]]
  $region66: #{tpu_custom_call.1} parent=0
    _
  %s10 = ssub.s32 1, %s8
  %s11 = scalar_select 0, %s10, %s8
  $region1: #{tpu_custom_call.1} parent=0
    #allocation2 [shape = 'u8[4096]{0}', space=vmem, size = 0x1000, scoped, tag = 'input window, operand 0, single buffered']
    #allocation3 [shape = 's32[1]{0}', space=sflag, size = 0x4, scoped, tag = 'scoped memory for tpu_custom_call.1']
    #allocation4 [shape = 's32[1]{0}', space=sflag, size = 0x4, scoped, tag = 'scoped memory for tpu_custom_call.1']
    #allocation5 [shape = 'u8[65536]{0}', space=vmem, size = 0x10000, scoped, tag = 'input window, operand 1, single buffered']
    #allocation6 [shape = 's32[1]{0}', space=sflag, size = 0x4, scoped, tag = 'scoped memory for tpu_custom_call.1']
    #allocation7 [shape = 'u8[1024]{0}', space=vmem, size = 0x400, scoped, tag = 'input window, operand 2, single buffered']
    #allocation8 [shape = 'u8[262144]{0}', space=vmem, size = 0x40000, scoped, tag = 'input window, operand 3, single buffered']
    #allocation9 [shape = 's32[1]{0}', space=sflag, size = 0x4, scoped, tag = 'scoped memory for tpu_custom_call.1']
    #allocation10 [shape = 'u8[2048]{0}', space=vmem, size = 0x800, scoped, tag = 'input window, operand 4, single buffered']
    #allocation11 [shape = 'u8[1048576]{0}', space=vmem, size = 0x100000, scoped, tag = 'input window, operand 5, single buffered']
    #allocation12 [shape = 's32[1]{0}', space=sflag, size = 0x4, scoped, tag = 'scoped memory for tpu_custom_call.1']
    #allocation13 [shape = 'u8[4096]{0}', space=vmem, size = 0x1000, scoped, tag = 'input window, operand 6, single buffered']
    #allocation14 [shape = 'u8[32768]{0}', space=vmem, size = 0x8000, scoped, tag = 'output window, operand 0, single buffered']
    %12 = vsyncpa [#allocation3], 0
    %13 = vsyncpa [#allocation6], 0
    %14 = vsyncpa [#allocation9], 0
    %15 = vsyncpa [#allocation12], 0
    %16 = vsyncpa [#allocation4], 0
    // Predicated region
    $region2: #{tpu_custom_call.1} parent=1 // pred_check
      _
    $region3: #{tpu_custom_call.1} parent=1 // pred_check_branch
      %18 = sbr.rel (0) target = $region5
    $region4: #{tpu_custom_call.1} parent=1 // pred_region
      %20 = vsyncadd [#allocation3], 0
      %s22 = sshll.u32 %s0, 4
      %s23 = int_to_ptr.hbm [resolvable:$true] %s22
      %s24 = sshll.u32 [#allocation2], 4
      %s25 = int_to_ptr.vmem [resolvable:$true] %s24
      %27 = dma.hbm_to_vmem [thread:$0]  %s23, 128, %s25, [#allocation3]
    $region5: #{tpu_custom_call.1} parent=1 // pred_fallthru
      _
    // Predicated region
    $region6: #{tpu_custom_call.1} parent=1 // pred_check
      _
    $region7: #{tpu_custom_call.1} parent=1 // pred_check_branch
      %29 = sbr.rel (0) target = $region9
    $region8: #{tpu_custom_call.1} parent=1 // pred_region
      %31 = vsyncadd [#allocation6], 0
      %s32 = sshll.u32 %s1, 4
      %s33 = int_to_ptr.hbm [resolvable:$true] %s32
      %s34 = sshll.u32 [#allocation5], 4
      %s35 = int_to_ptr.vmem [resolvable:$true] %s34
      %40 = dma.hbm_to_vmem [thread:$0]  %s33, 2048, %s35, [#allocation6], 128, 128, 8
    $region9: #{tpu_custom_call.1} parent=1 // pred_fallthru
      _
    // Predicated region
    $region10: #{tpu_custom_call.1} parent=1 // pred_check
      _
    $region11: #{tpu_custom_call.1} parent=1 // pred_check_branch
      %42 = sbr.rel (0) target = $region13
    $region12: #{tpu_custom_call.1} parent=1 // pred_region
      %44 = vsyncadd [#allocation6], 0
      %s46 = sshll.u32 %s2, 4
      %s47 = int_to_ptr.hbm [resolvable:$true] %s46
      %s48 = sshll.u32 [#allocation7], 4
      %s49 = int_to_ptr.vmem [resolvable:$true] %s48
      %51 = dma.hbm_to_vmem [thread:$0]  %s47, 32, %s49, [#allocation6]
    $region13: #{tpu_custom_call.1} parent=1 // pred_fallthru
      _
    // Predicated region
    $region14: #{tpu_custom_call.1} parent=1 // pred_check
      _
    $region15: #{tpu_custom_call.1} parent=1 // pred_check_branch
      %53 = sbr.rel (0) target = $region17
    $region16: #{tpu_custom_call.1} parent=1 // pred_region
      %55 = vsyncadd [#allocation9], 0
      %s56 = sshll.u32 %s3, 4
      %s57 = int_to_ptr.hbm [resolvable:$true] %s56
      %s58 = sshll.u32 [#allocation8], 4
      %s59 = int_to_ptr.vmem [resolvable:$true] %s58
      %64 = dma.hbm_to_vmem [thread:$0]  %s57, 8192, %s59, [#allocation9], 256, 256, 16
    $region17: #{tpu_custom_call.1} parent=1 // pred_fallthru
      _
    // Predicated region
    $region18: #{tpu_custom_call.1} parent=1 // pred_check
      _
    $region19: #{tpu_custom_call.1} parent=1 // pred_check_branch
      %66 = sbr.rel (0) target = $region21
    $region20: #{tpu_custom_call.1} parent=1 // pred_region
      %68 = vsyncadd [#allocation9], 0
      %s70 = sshll.u32 %s4, 4
      %s71 = int_to_ptr.hbm [resolvable:$true] %s70
      %s72 = sshll.u32 [#allocation10], 4
      %s73 = int_to_ptr.vmem [resolvable:$true] %s72
      %75 = dma.hbm_to_vmem [thread:$0]  %s71, 64, %s73, [#allocation9]
    $region21: #{tpu_custom_call.1} parent=1 // pred_fallthru
      _
    // Predicated region
    $region22: #{tpu_custom_call.1} parent=1 // pred_check
      _
    $region23: #{tpu_custom_call.1} parent=1 // pred_check_branch
      %77 = sbr.rel (0) target = $region25
    $region24: #{tpu_custom_call.1} parent=1 // pred_region
      %79 = vsyncadd [#allocation12], 0
      %s80 = sshll.u32 %s5, 4
      %s81 = int_to_ptr.hbm [resolvable:$true] %s80
      %s82 = sshll.u32 [#allocation11], 4
      %s83 = int_to_ptr.vmem [resolvable:$true] %s82
      %88 = dma.hbm_to_vmem [thread:$0]  %s81, 32768, %s83, [#allocation12], 512, 512, 32
    $region25: #{tpu_custom_call.1} parent=1 // pred_fallthru
      _
    // Predicated region
    $region26: #{tpu_custom_call.1} parent=1 // pred_check
      _
    $region27: #{tpu_custom_call.1} parent=1 // pred_check_branch
      %90 = sbr.rel (0) target = $region29
    $region28: #{tpu_custom_call.1} parent=1 // pred_region
      %92 = vsyncadd [#allocation12], 0
      %s94 = sshll.u32 %s6, 4
      %s95 = int_to_ptr.hbm [resolvable:$true] %s94
      %s96 = sshll.u32 [#allocation13], 4
      %s97 = int_to_ptr.vmem [resolvable:$true] %s96
      %99 = dma.hbm_to_vmem [thread:$0]  %s95, 128, %s97, [#allocation12]
    $region29: #{tpu_custom_call.1} parent=1 // pred_fallthru
      _
    // Predicated region
    $region30: #{tpu_custom_call.1} parent=1 // pred_check
      _
    $region31: #{tpu_custom_call.1} parent=1 // pred_check_branch
      %101 = sbr.rel (0) target = $region33
    $region32: #{tpu_custom_call.1} parent=1 // pred_region
      %103 = dma.done [#allocation3], 128
    $region33: #{tpu_custom_call.1} parent=1 // pred_fallthru
      _
    // Predicated region
    $region34: #{tpu_custom_call.1} parent=1 // pred_check
      _
    $region35: #{tpu_custom_call.1} parent=1 // pred_check_branch
      %105 = sbr.rel (0) target = $region37
    $region36: #{tpu_custom_call.1} parent=1 // pred_region
      %107 = dma.done [#allocation6], 2048
    $region37: #{tpu_custom_call.1} parent=1 // pred_fallthru
      _
    // Predicated region
    $region38: #{tpu_custom_call.1} parent=1 // pred_check
      _
    $region39: #{tpu_custom_call.1} parent=1 // pred_check_branch
      %109 = sbr.rel (0) target = $region41
    $region40: #{tpu_custom_call.1} parent=1 // pred_region
      %111 = dma.done [#allocation6], 32
    $region41: #{tpu_custom_call.1} parent=1 // pred_fallthru
      _
    // Predicated region
    $region42: #{tpu_custom_call.1} parent=1 // pred_check
      _
    $region43: #{tpu_custom_call.1} parent=1 // pred_check_branch
      %113 = sbr.rel (0) target = $region45
    $region44: #{tpu_custom_call.1} parent=1 // pred_region
      %115 = dma.done [#allocation9], 8192
    $region45: #{tpu_custom_call.1} parent=1 // pred_fallthru
      _
    // Predicated region
    $region46: #{tpu_custom_call.1} parent=1 // pred_check
      _
    $region47: #{tpu_custom_call.1} parent=1 // pred_check_branch
      %117 = sbr.rel (0) target = $region49
    $region48: #{tpu_custom_call.1} parent=1 // pred_region
      %119 = dma.done [#allocation9], 64
    $region49: #{tpu_custom_call.1} parent=1 // pred_fallthru
      _
    // Predicated region
    $region50: #{tpu_custom_call.1} parent=1 // pred_check
      _
    $region51: #{tpu_custom_call.1} parent=1 // pred_check_branch
      %121 = sbr.rel (0) target = $region53
    $region52: #{tpu_custom_call.1} parent=1 // pred_region
      %123 = dma.done [#allocation12], 32768
    $region53: #{tpu_custom_call.1} parent=1 // pred_fallthru
      _
    // Predicated region
    $region54: #{tpu_custom_call.1} parent=1 // pred_check
      _
    $region55: #{tpu_custom_call.1} parent=1 // pred_check_branch
      %125 = sbr.rel (0) target = $region57
    $region56: #{tpu_custom_call.1} parent=1 // pred_region
      %127 = dma.done [#allocation12], 128
    $region57: #{tpu_custom_call.1} parent=1 // pred_fallthru
      _
    %v128 = vld [vmem:[#allocation2] sm:$0xff]
    %v129 = vpack.c.bf16 %v128, %v128
    %v130 = vld [vmem:[#allocation5] sm:$0xff]
    %v131 = vld [vmem:[#allocation5 + $0x8] sm:$0xff]
    %v132 = vld [vmem:[#allocation5 + $0x10] sm:$0xff]
    %v133 = vld [vmem:[#allocation5 + $0x18] sm:$0xff]
    %v134 = vld [vmem:[#allocation5 + $0x20] sm:$0xff]
    %v135 = vld [vmem:[#allocation5 + $0x28] sm:$0xff]
    %v136 = vld [vmem:[#allocation5 + $0x30] sm:$0xff]
    %v137 = vld [vmem:[#allocation5 + $0x38] sm:$0xff]
    %v138 = vld [vmem:[#allocation5 + $0x40] sm:$0xff]
    %v139 = vld [vmem:[#allocation5 + $0x48] sm:$0xff]
    %v140 = vld [vmem:[#allocation5 + $0x50] sm:$0xff]
    %v141 = vld [vmem:[#allocation5 + $0x58] sm:$0xff]
    %v142 = vld [vmem:[#allocation5 + $0x60] sm:$0xff]
    %v143 = vld [vmem:[#allocation5 + $0x68] sm:$0xff]
    %v144 = vld [vmem:[#allocation5 + $0x70] sm:$0xff]
    %v145 = vld [vmem:[#allocation5 + $0x78] sm:$0xff]
    %v146 = vld [vmem:[#allocation7] sm:$0x3]
    %v148 = vperm.slane %v146, 0
    %v149 = vperm.slane %v146, 1
    %v168 = vunpack.c.l.b16 %v130
    %v169 = vunpack.c.h.b16 %v130
    %v170 = vunpack.c.l.b16 %v131
    %v171 = vunpack.c.h.b16 %v131
    %v172 = vunpack.c.l.b16 %v132
    %v173 = vunpack.c.h.b16 %v132
    %v174 = vunpack.c.l.b16 %v133
    %v175 = vunpack.c.h.b16 %v133
    %v176 = vunpack.c.l.b16 %v134
    %v177 = vunpack.c.h.b16 %v134
    %v178 = vunpack.c.l.b16 %v135
    %v179 = vunpack.c.h.b16 %v135
    %v180 = vunpack.c.l.b16 %v136
    %v181 = vunpack.c.h.b16 %v136
    %v182 = vunpack.c.l.b16 %v137
    %v183 = vunpack.c.h.b16 %v137
    %v184 = vunpack.c.l.b16 %v138
    %v185 = vunpack.c.h.b16 %v138
    %v186 = vunpack.c.l.b16 %v139
    %v187 = vunpack.c.h.b16 %v139
    %v188 = vunpack.c.l.b16 %v140
    %v189 = vunpack.c.h.b16 %v140
    %v190 = vunpack.c.l.b16 %v141
    %v191 = vunpack.c.h.b16 %v141
    %v192 = vunpack.c.l.b16 %v142
    %v193 = vunpack.c.h.b16 %v142
    %v194 = vunpack.c.l.b16 %v143
    %v195 = vunpack.c.h.b16 %v143
    %v196 = vunpack.c.l.b16 %v144
    %v197 = vunpack.c.h.b16 %v144
    %v198 = vunpack.c.l.b16 %v145
    %v199 = vunpack.c.h.b16 %v145
    %v200 = vpack.c.b16 %v170, %v168
    %v201 = vpack.c.b16 %v171, %v169
    %v202 = vpack.c.b16 %v174, %v172
    %v203 = vpack.c.b16 %v175, %v173
    %v204 = vpack.c.b16 %v178, %v176
    %v205 = vpack.c.b16 %v179, %v177
    %v206 = vpack.c.b16 %v182, %v180
    %v207 = vpack.c.b16 %v183, %v181
    %v208 = vpack.c.b16 %v186, %v184
    %v209 = vpack.c.b16 %v187, %v185
    %v210 = vpack.c.b16 %v190, %v188
    %v211 = vpack.c.b16 %v191, %v189
    %v212 = vpack.c.b16 %v194, %v192
    %v213 = vpack.c.b16 %v195, %v193
    %v214 = vpack.c.b16 %v198, %v196
    %v215 = vpack.c.b16 %v199, %v197
    %232 = vmatpush.bf16.msra.mxu0 %v214
    %233 = vmatpush.bf16.msra.mxu0 %v212
    %234 = vmatpush.bf16.msra.mxu0 %v210
    %235 = vmatpush.bf16.msra.mxu0 %v208
    %236 = vmatpush.bf16.msra.mxu0 %v206
    %237 = vmatpush.bf16.msra.mxu0 %v204
    %238 = vmatpush.bf16.msra.mxu0 %v202
    %239 = vmatpush.bf16.msra.mxu0 %v200
    %240 = vmatmul.bf16.gmra.mxu0 %v129
    %v241 = vpop.f32.mrf.mxu0
    %v242 = vadd.f32 %v148, %v241
    %v243 = vpop.f32.mrf.mxu0
    %244 = vdwg.mxu0
    %245 = vmatpush.bf16.msra.mxu0 %v215
    %246 = vmatpush.bf16.msra.mxu0 %v213
    %247 = vmatpush.bf16.msra.mxu0 %v211
    %248 = vmatpush.bf16.msra.mxu0 %v209
    %249 = vmatpush.bf16.msra.mxu0 %v207
    %250 = vmatpush.bf16.msra.mxu0 %v205
    %251 = vmatpush.bf16.msra.mxu0 %v203
    %252 = vmatpush.bf16.msra.mxu0 %v201
    %253 = vmatmul.bf16.gmra.mxu0 %v129
    %v254 = vpop.f32.mrf.mxu0
    %v255 = vadd.f32 %v149, %v254
    %v256 = vpop.f32.mrf.mxu0
    %257 = vdwg.mxu0
    %v258 = vmax.f32 %v242, 0.0
    %v259 = vmax.f32 %v255, 0.0
    %v260 = vpack.c.bf16 %v258, %v258
    %v261 = vpack.c.bf16 %v259, %v259
    %v262 = vld [vmem:[#allocation8] sm:$0xff]
    %v263 = vld [vmem:[#allocation8 + $0x8] sm:$0xff]
    %v264 = vld [vmem:[#allocation8 + $0x10] sm:$0xff]
    %v265 = vld [vmem:[#allocation8 + $0x18] sm:$0xff]
    %v266 = vld [vmem:[#allocation8 + $0x20] sm:$0xff]
    %v267 = vld [vmem:[#allocation8 + $0x28] sm:$0xff]
    %v268 = vld [vmem:[#allocation8 + $0x30] sm:$0xff]
    %v269 = vld [vmem:[#allocation8 + $0x38] sm:$0xff]
    %v270 = vld [vmem:[#allocation8 + $0x40] sm:$0xff]
    %v271 = vld [vmem:[#allocation8 + $0x48] sm:$0xff]
    %v272 = vld [vmem:[#allocation8 + $0x50] sm:$0xff]
    %v273 = vld [vmem:[#allocation8 + $0x58] sm:$0xff]
    %v274 = vld [vmem:[#allocation8 + $0x60] sm:$0xff]
    %v275 = vld [vmem:[#allocation8 + $0x68] sm:$0xff]
    %v276 = vld [vmem:[#allocation8 + $0x70] sm:$0xff]
    %v277 = vld [vmem:[#allocation8 + $0x78] sm:$0xff]
    %v278 = vld [vmem:[#allocation8 + $0x80] sm:$0xff]
    %v279 = vld [vmem:[#allocation8 + $0x88] sm:$0xff]
    %v280 = vld [vmem:[#allocation8 + $0x90] sm:$0xff]
    %v281 = vld [vmem:[#allocation8 + $0x98] sm:$0xff]
    %v282 = vld [vmem:[#allocation8 + $0xa0] sm:$0xff]
    %v283 = vld [vmem:[#allocation8 + $0xa8] sm:$0xff]
    %v284 = vld [vmem:[#allocation8 + $0xb0] sm:$0xff]
    %v285 = vld [vmem:[#allocation8 + $0xb8] sm:$0xff]
    %v286 = vld [vmem:[#allocation8 + $0xc0] sm:$0xff]
    %v287 = vld [vmem:[#allocation8 + $0xc8] sm:$0xff]
    %v288 = vld [vmem:[#allocation8 + $0xd0] sm:$0xff]
    %v289 = vld [vmem:[#allocation8 + $0xd8] sm:$0xff]
    %v290 = vld [vmem:[#allocation8 + $0xe0] sm:$0xff]
    %v291 = vld [vmem:[#allocation8 + $0xe8] sm:$0xff]
    %v292 = vld [vmem:[#allocation8 + $0xf0] sm:$0xff]
    %v293 = vld [vmem:[#allocation8 + $0xf8] sm:$0xff]
    %v294 = vld [vmem:[#allocation8 + $0x100] sm:$0xff]
    %v295 = vld [vmem:[#allocation8 + $0x108] sm:$0xff]
    %v296 = vld [vmem:[#allocation8 + $0x110] sm:$0xff]
    %v297 = vld [vmem:[#allocation8 + $0x118] sm:$0xff]
    %v298 = vld [vmem:[#allocation8 + $0x120] sm:$0xff]
    %v299 = vld [vmem:[#allocation8 + $0x128] sm:$0xff]
    %v300 = vld [vmem:[#allocation8 + $0x130] sm:$0xff]
    %v301 = vld [vmem:[#allocation8 + $0x138] sm:$0xff]
    %v302 = vld [vmem:[#allocation8 + $0x140] sm:$0xff]
    %v303 = vld [vmem:[#allocation8 + $0x148] sm:$0xff]
    %v304 = vld [vmem:[#allocation8 + $0x150] sm:$0xff]
    %v305 = vld [vmem:[#allocation8 + $0x158] sm:$0xff]
    %v306 = vld [vmem:[#allocation8 + $0x160] sm:$0xff]
    %v307 = vld [vmem:[#allocation8 + $0x168] sm:$0xff]
    %v308 = vld [vmem:[#allocation8 + $0x170] sm:$0xff]
    %v309 = vld [vmem:[#allocation8 + $0x178] sm:$0xff]
    %v310 = vld [vmem:[#allocation8 + $0x180] sm:$0xff]
    %v311 = vld [vmem:[#allocation8 + $0x188] sm:$0xff]
    %v312 = vld [vmem:[#allocation8 + $0x190] sm:$0xff]
    %v313 = vld [vmem:[#allocation8 + $0x198] sm:$0xff]
    %v314 = vld [vmem:[#allocation8 + $0x1a0] sm:$0xff]
    %v315 = vld [vmem:[#allocation8 + $0x1a8] sm:$0xff]
    %v316 = vld [vmem:[#allocation8 + $0x1b0] sm:$0xff]
    %v317 = vld [vmem:[#allocation8 + $0x1b8] sm:$0xff]
    %v318 = vld [vmem:[#allocation8 + $0x1c0] sm:$0xff]
    %v319 = vld [vmem:[#allocation8 + $0x1c8] sm:$0xff]
    %v320 = vld [vmem:[#allocation8 + $0x1d0] sm:$0xff]
    %v321 = vld [vmem:[#allocation8 + $0x1d8] sm:$0xff]
    %v322 = vld [vmem:[#allocation8 + $0x1e0] sm:$0xff]
    %v323 = vld [vmem:[#allocation8 + $0x1e8] sm:$0xff]
    %v324 = vld [vmem:[#allocation8 + $0x1f0] sm:$0xff]
    %v325 = vld [vmem:[#allocation8 + $0x1f8] sm:$0xff]
    %v326 = vld [vmem:[#allocation10] sm:$0xf]
    %v328 = vperm.slane %v326, 0
    %v329 = vperm.slane %v326, 1
    %v330 = vperm.slane %v326, 2
    %v331 = vperm.slane %v326, 3
    %v400 = vunpack.c.l.b16 %v262
    %v401 = vunpack.c.h.b16 %v262
    %v402 = vunpack.c.l.b16 %v263
    %v403 = vunpack.c.h.b16 %v263
    %v404 = vunpack.c.l.b16 %v264
    %v405 = vunpack.c.h.b16 %v264
    %v406 = vunpack.c.l.b16 %v265
    %v407 = vunpack.c.h.b16 %v265
    %v408 = vunpack.c.l.b16 %v266
    %v409 = vunpack.c.h.b16 %v266
    %v410 = vunpack.c.l.b16 %v267
    %v411 = vunpack.c.h.b16 %v267
    %v412 = vunpack.c.l.b16 %v268
    %v413 = vunpack.c.h.b16 %v268
    %v414 = vunpack.c.l.b16 %v269
    %v415 = vunpack.c.h.b16 %v269
    %v416 = vunpack.c.l.b16 %v270
    %v417 = vunpack.c.h.b16 %v270
    %v418 = vunpack.c.l.b16 %v271
    %v419 = vunpack.c.h.b16 %v271
    %v420 = vunpack.c.l.b16 %v272
    %v421 = vunpack.c.h.b16 %v272
    %v422 = vunpack.c.l.b16 %v273
    %v423 = vunpack.c.h.b16 %v273
    %v424 = vunpack.c.l.b16 %v274
    %v425 = vunpack.c.h.b16 %v274
    %v426 = vunpack.c.l.b16 %v275
    %v427 = vunpack.c.h.b16 %v275
    %v428 = vunpack.c.l.b16 %v276
    %v429 = vunpack.c.h.b16 %v276
    %v430 = vunpack.c.l.b16 %v277
    %v431 = vunpack.c.h.b16 %v277
    %v432 = vunpack.c.l.b16 %v278
    %v433 = vunpack.c.h.b16 %v278
    %v434 = vunpack.c.l.b16 %v279
    %v435 = vunpack.c.h.b16 %v279
    %v436 = vunpack.c.l.b16 %v280
    %v437 = vunpack.c.h.b16 %v280
    %v438 = vunpack.c.l.b16 %v281
    %v439 = vunpack.c.h.b16 %v281
    %v440 = vunpack.c.l.b16 %v282
    %v441 = vunpack.c.h.b16 %v282
    %v442 = vunpack.c.l.b16 %v283
    %v443 = vunpack.c.h.b16 %v283
    %v444 = vunpack.c.l.b16 %v284
    %v445 = vunpack.c.h.b16 %v284
    %v446 = vunpack.c.l.b16 %v285
    %v447 = vunpack.c.h.b16 %v285
    %v448 = vunpack.c.l.b16 %v286
    %v449 = vunpack.c.h.b16 %v286
    %v450 = vunpack.c.l.b16 %v287
    %v451 = vunpack.c.h.b16 %v287
    %v452 = vunpack.c.l.b16 %v288
    %v453 = vunpack.c.h.b16 %v288
    %v454 = vunpack.c.l.b16 %v289
    %v455 = vunpack.c.h.b16 %v289
    %v456 = vunpack.c.l.b16 %v290
    %v457 = vunpack.c.h.b16 %v290
    %v458 = vunpack.c.l.b16 %v291
    %v459 = vunpack.c.h.b16 %v291
    %v460 = vunpack.c.l.b16 %v292
    %v461 = vunpack.c.h.b16 %v292
    %v462 = vunpack.c.l.b16 %v293
    %v463 = vunpack.c.h.b16 %v293
    %v464 = vunpack.c.l.b16 %v294
    %v465 = vunpack.c.h.b16 %v294
    %v466 = vunpack.c.l.b16 %v295
    %v467 = vunpack.c.h.b16 %v295
    %v468 = vunpack.c.l.b16 %v296
    %v469 = vunpack.c.h.b16 %v296
    %v470 = vunpack.c.l.b16 %v297
    %v471 = vunpack.c.h.b16 %v297
    %v472 = vunpack.c.l.b16 %v298
    %v473 = vunpack.c.h.b16 %v298
    %v474 = vunpack.c.l.b16 %v299
    %v475 = vunpack.c.h.b16 %v299
    %v476 = vunpack.c.l.b16 %v300
    %v477 = vunpack.c.h.b16 %v300
    %v478 = vunpack.c.l.b16 %v301
    %v479 = vunpack.c.h.b16 %v301
    %v480 = vunpack.c.l.b16 %v302
    %v481 = vunpack.c.h.b16 %v302
    %v482 = vunpack.c.l.b16 %v303
    %v483 = vunpack.c.h.b16 %v303
    %v484 = vunpack.c.l.b16 %v304
    %v485 = vunpack.c.h.b16 %v304
    %v486 = vunpack.c.l.b16 %v305
    %v487 = vunpack.c.h.b16 %v305
    %v488 = vunpack.c.l.b16 %v306
    %v489 = vunpack.c.h.b16 %v306
    %v490 = vunpack.c.l.b16 %v307
    %v491 = vunpack.c.h.b16 %v307
    %v492 = vunpack.c.l.b16 %v308
    %v493 = vunpack.c.h.b16 %v308
    %v494 = vunpack.c.l.b16 %v309
    %v495 = vunpack.c.h.b16 %v309
    %v496 = vunpack.c.l.b16 %v310
    %v497 = vunpack.c.h.b16 %v310
    %v498 = vunpack.c.l.b16 %v311
    %v499 = vunpack.c.h.b16 %v311
    %v500 = vunpack.c.l.b16 %v312
    %v501 = vunpack.c.h.b16 %v312
    %v502 = vunpack.c.l.b16 %v313
    %v503 = vunpack.c.h.b16 %v313
    %v504 = vunpack.c.l.b16 %v314
    %v505 = vunpack.c.h.b16 %v314
    %v506 = vunpack.c.l.b16 %v315
    %v507 = vunpack.c.h.b16 %v315
    %v508 = vunpack.c.l.b16 %v316
    %v509 = vunpack.c.h.b16 %v316
    %v510 = vunpack.c.l.b16 %v317
    %v511 = vunpack.c.h.b16 %v317
    %v512 = vunpack.c.l.b16 %v318
    %v513 = vunpack.c.h.b16 %v318
    %v514 = vunpack.c.l.b16 %v319
    %v515 = vunpack.c.h.b16 %v319
    %v516 = vunpack.c.l.b16 %v320
    %v517 = vunpack.c.h.b16 %v320
    %v518 = vunpack.c.l.b16 %v321
    %v519 = vunpack.c.h.b16 %v321
    %v520 = vunpack.c.l.b16 %v322
    %v521 = vunpack.c.h.b16 %v322
    %v522 = vunpack.c.l.b16 %v323
    %v523 = vunpack.c.h.b16 %v323
    %v524 = vunpack.c.l.b16 %v324
    %v525 = vunpack.c.h.b16 %v324
    %v526 = vunpack.c.l.b16 %v325
    %v527 = vunpack.c.h.b16 %v325
    %v528 = vpack.c.b16 %v404, %v400
    %v529 = vpack.c.b16 %v405, %v401
    %v530 = vpack.c.b16 %v406, %v402
    %v531 = vpack.c.b16 %v407, %v403
    %v532 = vpack.c.b16 %v412, %v408
    %v533 = vpack.c.b16 %v413, %v409
    %v534 = vpack.c.b16 %v414, %v410
    %v535 = vpack.c.b16 %v415, %v411
    %v536 = vpack.c.b16 %v420, %v416
    %v537 = vpack.c.b16 %v421, %v417
    %v538 = vpack.c.b16 %v422, %v418
    %v539 = vpack.c.b16 %v423, %v419
    %v540 = vpack.c.b16 %v428, %v424
    %v541 = vpack.c.b16 %v429, %v425
    %v542 = vpack.c.b16 %v430, %v426
    %v543 = vpack.c.b16 %v431, %v427
    %v544 = vpack.c.b16 %v436, %v432
    %v545 = vpack.c.b16 %v437, %v433
    %v546 = vpack.c.b16 %v438, %v434
    %v547 = vpack.c.b16 %v439, %v435
    %v548 = vpack.c.b16 %v444, %v440
    %v549 = vpack.c.b16 %v445, %v441
    %v550 = vpack.c.b16 %v446, %v442
    %v551 = vpack.c.b16 %v447, %v443
    %v552 = vpack.c.b16 %v452, %v448
    %v553 = vpack.c.b16 %v453, %v449
    %v554 = vpack.c.b16 %v454, %v450
    %v555 = vpack.c.b16 %v455, %v451
    %v556 = vpack.c.b16 %v460, %v456
    %v557 = vpack.c.b16 %v461, %v457
    %v558 = vpack.c.b16 %v462, %v458
    %v559 = vpack.c.b16 %v463, %v459
    %v560 = vpack.c.b16 %v468, %v464
    %v561 = vpack.c.b16 %v469, %v465
    %v562 = vpack.c.b16 %v470, %v466
    %v563 = vpack.c.b16 %v471, %v467
    %v564 = vpack.c.b16 %v476, %v472
    %v565 = vpack.c.b16 %v477, %v473
    %v566 = vpack.c.b16 %v478, %v474
    %v567 = vpack.c.b16 %v479, %v475
    %v568 = vpack.c.b16 %v484, %v480
    %v569 = vpack.c.b16 %v485, %v481
    %v570 = vpack.c.b16 %v486, %v482
    %v571 = vpack.c.b16 %v487, %v483
    %v572 = vpack.c.b16 %v492, %v488
    %v573 = vpack.c.b16 %v493, %v489
    %v574 = vpack.c.b16 %v494, %v490
    %v575 = vpack.c.b16 %v495, %v491
    %v576 = vpack.c.b16 %v500, %v496
    %v577 = vpack.c.b16 %v501, %v497
    %v578 = vpack.c.b16 %v502, %v498
    %v579 = vpack.c.b16 %v503, %v499
    %v580 = vpack.c.b16 %v508, %v504
    %v581 = vpack.c.b16 %v509, %v505
    %v582 = vpack.c.b16 %v510, %v506
    %v583 = vpack.c.b16 %v511, %v507
    %v584 = vpack.c.b16 %v516, %v512
    %v585 = vpack.c.b16 %v517, %v513
    %v586 = vpack.c.b16 %v518, %v514
    %v587 = vpack.c.b16 %v519, %v515
    %v588 = vpack.c.b16 %v524, %v520
    %v589 = vpack.c.b16 %v525, %v521
    %v590 = vpack.c.b16 %v526, %v522
    %v591 = vpack.c.b16 %v527, %v523
    %656 = vmatpush.bf16.msra.mxu0 %v556
    %657 = vmatpush.bf16.msra.mxu0 %v552
    %658 = vmatpush.bf16.msra.mxu0 %v548
    %659 = vmatpush.bf16.msra.mxu0 %v544
    %660 = vmatpush.bf16.msra.mxu0 %v540
    %661 = vmatpush.bf16.msra.mxu0 %v536
    %662 = vmatpush.bf16.msra.mxu0 %v532
    %663 = vmatpush.bf16.msra.mxu0 %v528
    %664 = vmatmul.bf16.gmra.mxu0 %v260
    %v665 = vpop.f32.mrf.mxu0
    %v666 = vadd.f32 %v328, %v665
    %v667 = vpop.f32.mrf.mxu0
    %668 = vdwg.mxu0
    %669 = vmatpush.bf16.msra.mxu0 %v588
    %670 = vmatpush.bf16.msra.mxu0 %v584
    %671 = vmatpush.bf16.msra.mxu0 %v580
    %672 = vmatpush.bf16.msra.mxu0 %v576
    %673 = vmatpush.bf16.msra.mxu0 %v572
    %674 = vmatpush.bf16.msra.mxu0 %v568
    %675 = vmatpush.bf16.msra.mxu0 %v564
    %676 = vmatpush.bf16.msra.mxu0 %v560
    %677 = vmatmul.bf16.gmra.mxu0 %v261
    %v678 = vpop.f32.mrf.mxu0
    %v679 = vadd.f32 %v666, %v678
    %v680 = vpop.f32.mrf.mxu0
    %681 = vdwg.mxu0
    %682 = vmatpush.bf16.msra.mxu0 %v557
    %683 = vmatpush.bf16.msra.mxu0 %v553
    %684 = vmatpush.bf16.msra.mxu0 %v549
    %685 = vmatpush.bf16.msra.mxu0 %v545
    %686 = vmatpush.bf16.msra.mxu0 %v541
    %687 = vmatpush.bf16.msra.mxu0 %v537
    %688 = vmatpush.bf16.msra.mxu0 %v533
    %689 = vmatpush.bf16.msra.mxu0 %v529
    %690 = vmatmul.bf16.gmra.mxu0 %v260
    %v691 = vpop.f32.mrf.mxu0
    %v692 = vadd.f32 %v329, %v691
    %v693 = vpop.f32.mrf.mxu0
    %694 = vdwg.mxu0
    %695 = vmatpush.bf16.msra.mxu0 %v589
    %696 = vmatpush.bf16.msra.mxu0 %v585
    %697 = vmatpush.bf16.msra.mxu0 %v581
    %698 = vmatpush.bf16.msra.mxu0 %v577
    %699 = vmatpush.bf16.msra.mxu0 %v573
    %700 = vmatpush.bf16.msra.mxu0 %v569
    %701 = vmatpush.bf16.msra.mxu0 %v565
    %702 = vmatpush.bf16.msra.mxu0 %v561
    %703 = vmatmul.bf16.gmra.mxu0 %v261
    %v704 = vpop.f32.mrf.mxu0
    %v705 = vadd.f32 %v692, %v704
    %v706 = vpop.f32.mrf.mxu0
    %707 = vdwg.mxu0
    %708 = vmatpush.bf16.msra.mxu0 %v558
    %709 = vmatpush.bf16.msra.mxu0 %v554
    %710 = vmatpush.bf16.msra.mxu0 %v550
    %711 = vmatpush.bf16.msra.mxu0 %v546
    %712 = vmatpush.bf16.msra.mxu0 %v542
    %713 = vmatpush.bf16.msra.mxu0 %v538
    %714 = vmatpush.bf16.msra.mxu0 %v534
    %715 = vmatpush.bf16.msra.mxu0 %v530
    %716 = vmatmul.bf16.gmra.mxu0 %v260
    %v717 = vpop.f32.mrf.mxu0
    %v718 = vadd.f32 %v330, %v717
    %v719 = vpop.f32.mrf.mxu0
    %720 = vdwg.mxu0
    %721 = vmatpush.bf16.msra.mxu0 %v590
    %722 = vmatpush.bf16.msra.mxu0 %v586
    %723 = vmatpush.bf16.msra.mxu0 %v582
    %724 = vmatpush.bf16.msra.mxu0 %v578
    %725 = vmatpush.bf16.msra.mxu0 %v574
    %726 = vmatpush.bf16.msra.mxu0 %v570
    %727 = vmatpush.bf16.msra.mxu0 %v566
    %728 = vmatpush.bf16.msra.mxu0 %v562
    %729 = vmatmul.bf16.gmra.mxu0 %v261
    %v730 = vpop.f32.mrf.mxu0
    %v731 = vadd.f32 %v718, %v730
    %v732 = vpop.f32.mrf.mxu0
    %733 = vdwg.mxu0
    %734 = vmatpush.bf16.msra.mxu0 %v559
    %735 = vmatpush.bf16.msra.mxu0 %v555
    %736 = vmatpush.bf16.msra.mxu0 %v551
    %737 = vmatpush.bf16.msra.mxu0 %v547
    %738 = vmatpush.bf16.msra.mxu0 %v543
    %739 = vmatpush.bf16.msra.mxu0 %v539
    %740 = vmatpush.bf16.msra.mxu0 %v535
    %741 = vmatpush.bf16.msra.mxu0 %v531
    %742 = vmatmul.bf16.gmra.mxu0 %v260
    %v743 = vpop.f32.mrf.mxu0
    %v744 = vadd.f32 %v331, %v743
    %v745 = vpop.f32.mrf.mxu0
    %746 = vdwg.mxu0
    %747 = vmatpush.bf16.msra.mxu0 %v591
    %748 = vmatpush.bf16.msra.mxu0 %v587
    %749 = vmatpush.bf16.msra.mxu0 %v583
    %750 = vmatpush.bf16.msra.mxu0 %v579
    %751 = vmatpush.bf16.msra.mxu0 %v575
    %752 = vmatpush.bf16.msra.mxu0 %v571
    %753 = vmatpush.bf16.msra.mxu0 %v567
    %754 = vmatpush.bf16.msra.mxu0 %v563
    %755 = vmatmul.bf16.gmra.mxu0 %v261
    %v756 = vpop.f32.mrf.mxu0
    %v757 = vadd.f32 %v744, %v756
    %v758 = vpop.f32.mrf.mxu0
    %759 = vdwg.mxu0
    %v760 = vmax.f32 %v679, 0.0
    %v761 = vmax.f32 %v705, 0.0
    %v762 = vmax.f32 %v731, 0.0
    %v763 = vmax.f32 %v757, 0.0
    %v764 = vpack.c.bf16 %v760, %v760
    %v765 = vpack.c.bf16 %v761, %v761
    %v766 = vpack.c.bf16 %v762, %v762
    %v767 = vpack.c.bf16 %v763, %v763
    %v768 = vld [vmem:[#allocation11] sm:$0xff]
    %v769 = vld [vmem:[#allocation11 + $0x8] sm:$0xff]
    %v770 = vld [vmem:[#allocation11 + $0x10] sm:$0xff]
    %v771 = vld [vmem:[#allocation11 + $0x18] sm:$0xff]
    %v772 = vld [vmem:[#allocation11 + $0x20] sm:$0xff]
    %v773 = vld [vmem:[#allocation11 + $0x28] sm:$0xff]
    %v774 = vld [vmem:[#allocation11 + $0x30] sm:$0xff]
    %v775 = vld [vmem:[#allocation11 + $0x38] sm:$0xff]
    %v776 = vld [vmem:[#allocation11 + $0x40] sm:$0xff]
    %v777 = vld [vmem:[#allocation11 + $0x48] sm:$0xff]
    %v778 = vld [vmem:[#allocation11 + $0x50] sm:$0xff]
    %v779 = vld [vmem:[#allocation11 + $0x58] sm:$0xff]
    %v780 = vld [vmem:[#allocation11 + $0x60] sm:$0xff]
    %v781 = vld [vmem:[#allocation11 + $0x68] sm:$0xff]
    %v782 = vld [vmem:[#allocation11 + $0x70] sm:$0xff]
    %v783 = vld [vmem:[#allocation11 + $0x78] sm:$0xff]
    %v784 = vld [vmem:[#allocation11 + $0x80] sm:$0xff]
    %v785 = vld [vmem:[#allocation11 + $0x88] sm:$0xff]
    %v786 = vld [vmem:[#allocation11 + $0x90] sm:$0xff]
    %v787 = vld [vmem:[#allocation11 + $0x98] sm:$0xff]
    %v788 = vld [vmem:[#allocation11 + $0xa0] sm:$0xff]
    %v789 = vld [vmem:[#allocation11 + $0xa8] sm:$0xff]
    %v790 = vld [vmem:[#allocation11 + $0xb0] sm:$0xff]
    %v791 = vld [vmem:[#allocation11 + $0xb8] sm:$0xff]
    %v792 = vld [vmem:[#allocation11 + $0xc0] sm:$0xff]
    %v793 = vld [vmem:[#allocation11 + $0xc8] sm:$0xff]
    %v794 = vld [vmem:[#allocation11 + $0xd0] sm:$0xff]
    %v795 = vld [vmem:[#allocation11 + $0xd8] sm:$0xff]
    %v796 = vld [vmem:[#allocation11 + $0xe0] sm:$0xff]
    %v797 = vld [vmem:[#allocation11 + $0xe8] sm:$0xff]
    %v798 = vld [vmem:[#allocation11 + $0xf0] sm:$0xff]
    %v799 = vld [vmem:[#allocation11 + $0xf8] sm:$0xff]
    %v800 = vld [vmem:[#allocation11 + $0x100] sm:$0xff]
    %v801 = vld [vmem:[#allocation11 + $0x108] sm:$0xff]
    %v802 = vld [vmem:[#allocation11 + $0x110] sm:$0xff]
    %v803 = vld [vmem:[#allocation11 + $0x118] sm:$0xff]
    %v804 = vld [vmem:[#allocation11 + $0x120] sm:$0xff]
    %v805 = vld [vmem:[#allocation11 + $0x128] sm:$0xff]
    %v806 = vld [vmem:[#allocation11 + $0x130] sm:$0xff]
    %v807 = vld [vmem:[#allocation11 + $0x138] sm:$0xff]
    %v808 = vld [vmem:[#allocation11 + $0x140] sm:$0xff]
    %v809 = vld [vmem:[#allocation11 + $0x148] sm:$0xff]
    %v810 = vld [vmem:[#allocation11 + $0x150] sm:$0xff]
    %v811 = vld [vmem:[#allocation11 + $0x158] sm:$0xff]
    %v812 = vld [vmem:[#allocation11 + $0x160] sm:$0xff]
    %v813 = vld [vmem:[#allocation11 + $0x168] sm:$0xff]
    %v814 = vld [vmem:[#allocation11 + $0x170] sm:$0xff]
    %v815 = vld [vmem:[#allocation11 + $0x178] sm:$0xff]
    %v816 = vld [vmem:[#allocation11 + $0x180] sm:$0xff]
    %v817 = vld [vmem:[#allocation11 + $0x188] sm:$0xff]
    %v818 = vld [vmem:[#allocation11 + $0x190] sm:$0xff]
    %v819 = vld [vmem:[#allocation11 + $0x198] sm:$0xff]
    %v820 = vld [vmem:[#allocation11 + $0x1a0] sm:$0xff]
    %v821 = vld [vmem:[#allocation11 + $0x1a8] sm:$0xff]
    %v822 = vld [vmem:[#allocation11 + $0x1b0] sm:$0xff]
    %v823 = vld [vmem:[#allocation11 + $0x1b8] sm:$0xff]
    %v824 = vld [vmem:[#allocation11 + $0x1c0] sm:$0xff]
    %v825 = vld [vmem:[#allocation11 + $0x1c8] sm:$0xff]
    %v826 = vld [vmem:[#allocation11 + $0x1d0] sm:$0xff]
    %v827 = vld [vmem:[#allocation11 + $0x1d8] sm:$0xff]
    %v828 = vld [vmem:[#allocation11 + $0x1e0] sm:$0xff]
    %v829 = vld [vmem:[#allocation11 + $0x1e8] sm:$0xff]
    %v830 = vld [vmem:[#allocation11 + $0x1f0] sm:$0xff]
    %v831 = vld [vmem:[#allocation11 + $0x1f8] sm:$0xff]
    %v832 = vld [vmem:[#allocation11 + $0x200] sm:$0xff]
    %v833 = vld [vmem:[#allocation11 + $0x208] sm:$0xff]
    %v834 = vld [vmem:[#allocation11 + $0x210] sm:$0xff]
    %v835 = vld [vmem:[#allocation11 + $0x218] sm:$0xff]
    %v836 = vld [vmem:[#allocation11 + $0x220] sm:$0xff]
    %v837 = vld [vmem:[#allocation11 + $0x228] sm:$0xff]
    %v838 = vld [vmem:[#allocation11 + $0x230] sm:$0xff]
    %v839 = vld [vmem:[#allocation11 + $0x238] sm:$0xff]
    %v840 = vld [vmem:[#allocation11 + $0x240] sm:$0xff]
    %v841 = vld [vmem:[#allocation11 + $0x248] sm:$0xff]
    %v842 = vld [vmem:[#allocation11 + $0x250] sm:$0xff]
    %v843 = vld [vmem:[#allocation11 + $0x258] sm:$0xff]
    %v844 = vld [vmem:[#allocation11 + $0x260] sm:$0xff]
    %v845 = vld [vmem:[#allocation11 + $0x268] sm:$0xff]
    %v846 = vld [vmem:[#allocation11 + $0x270] sm:$0xff]
    %v847 = vld [vmem:[#allocation11 + $0x278] sm:$0xff]
    %v848 = vld [vmem:[#allocation11 + $0x280] sm:$0xff]
    %v849 = vld [vmem:[#allocation11 + $0x288] sm:$0xff]
    %v850 = vld [vmem:[#allocation11 + $0x290] sm:$0xff]
    %v851 = vld [vmem:[#allocation11 + $0x298] sm:$0xff]
    %v852 = vld [vmem:[#allocation11 + $0x2a0] sm:$0xff]
    %v853 = vld [vmem:[#allocation11 + $0x2a8] sm:$0xff]
    %v854 = vld [vmem:[#allocation11 + $0x2b0] sm:$0xff]
    %v855 = vld [vmem:[#allocation11 + $0x2b8] sm:$0xff]
    %v856 = vld [vmem:[#allocation11 + $0x2c0] sm:$0xff]
    %v857 = vld [vmem:[#allocation11 + $0x2c8] sm:$0xff]
    %v858 = vld [vmem:[#allocation11 + $0x2d0] sm:$0xff]
    %v859 = vld [vmem:[#allocation11 + $0x2d8] sm:$0xff]
    %v860 = vld [vmem:[#allocation11 + $0x2e0] sm:$0xff]
    %v861 = vld [vmem:[#allocation11 + $0x2e8] sm:$0xff]
    %v862 = vld [vmem:[#allocation11 + $0x2f0] sm:$0xff]
    %v863 = vld [vmem:[#allocation11 + $0x2f8] sm:$0xff]
    %v864 = vld [vmem:[#allocation11 + $0x300] sm:$0xff]
    %v865 = vld [vmem:[#allocation11 + $0x308] sm:$0xff]
    %v866 = vld [vmem:[#allocation11 + $0x310] sm:$0xff]
    %v867 = vld [vmem:[#allocation11 + $0x318] sm:$0xff]
    %v868 = vld [vmem:[#allocation11 + $0x320] sm:$0xff]
    %v869 = vld [vmem:[#allocation11 + $0x328] sm:$0xff]
    %v870 = vld [vmem:[#allocation11 + $0x330] sm:$0xff]
    %v871 = vld [vmem:[#allocation11 + $0x338] sm:$0xff]
    %v872 = vld [vmem:[#allocation11 + $0x340] sm:$0xff]
    %v873 = vld [vmem:[#allocation11 + $0x348] sm:$0xff]
    %v874 = vld [vmem:[#allocation11 + $0x350] sm:$0xff]
    %v875 = vld [vmem:[#allocation11 + $0x358] sm:$0xff]
    %v876 = vld [vmem:[#allocation11 + $0x360] sm:$0xff]
    %v877 = vld [vmem:[#allocation11 + $0x368] sm:$0xff]
    %v878 = vld [vmem:[#allocation11 + $0x370] sm:$0xff]
    %v879 = vld [vmem:[#allocation11 + $0x378] sm:$0xff]
    %v880 = vld [vmem:[#allocation11 + $0x380] sm:$0xff]
    %v881 = vld [vmem:[#allocation11 + $0x388] sm:$0xff]
    %v882 = vld [vmem:[#allocation11 + $0x390] sm:$0xff]
    %v883 = vld [vmem:[#allocation11 + $0x398] sm:$0xff]
    %v884 = vld [vmem:[#allocation11 + $0x3a0] sm:$0xff]
    %v885 = vld [vmem:[#allocation11 + $0x3a8] sm:$0xff]
    %v886 = vld [vmem:[#allocation11 + $0x3b0] sm:$0xff]
    %v887 = vld [vmem:[#allocation11 + $0x3b8] sm:$0xff]
    %v888 = vld [vmem:[#allocation11 + $0x3c0] sm:$0xff]
    %v889 = vld [vmem:[#allocation11 + $0x3c8] sm:$0xff]
    %v890 = vld [vmem:[#allocation11 + $0x3d0] sm:$0xff]
    %v891 = vld [vmem:[#allocation11 + $0x3d8] sm:$0xff]
    %v892 = vld [vmem:[#allocation11 + $0x3e0] sm:$0xff]
    %v893 = vld [vmem:[#allocation11 + $0x3e8] sm:$0xff]
    %v894 = vld [vmem:[#allocation11 + $0x3f0] sm:$0xff]
    %v895 = vld [vmem:[#allocation11 + $0x3f8] sm:$0xff]
    %v896 = vld [vmem:[#allocation11 + $0x400] sm:$0xff]
    %v897 = vld [vmem:[#allocation11 + $0x408] sm:$0xff]
    %v898 = vld [vmem:[#allocation11 + $0x410] sm:$0xff]
    %v899 = vld [vmem:[#allocation11 + $0x418] sm:$0xff]
    %v900 = vld [vmem:[#allocation11 + $0x420] sm:$0xff]
    %v901 = vld [vmem:[#allocation11 + $0x428] sm:$0xff]
    %v902 = vld [vmem:[#allocation11 + $0x430] sm:$0xff]
    %v903 = vld [vmem:[#allocation11 + $0x438] sm:$0xff]
    %v904 = vld [vmem:[#allocation11 + $0x440] sm:$0xff]
    %v905 = vld [vmem:[#allocation11 + $0x448] sm:$0xff]
    %v906 = vld [vmem:[#allocation11 + $0x450] sm:$0xff]
    %v907 = vld [vmem:[#allocation11 + $0x458] sm:$0xff]
    %v908 = vld [vmem:[#allocation11 + $0x460] sm:$0xff]
    %v909 = vld [vmem:[#allocation11 + $0x468] sm:$0xff]
    %v910 = vld [vmem:[#allocation11 + $0x470] sm:$0xff]
    %v911 = vld [vmem:[#allocation11 + $0x478] sm:$0xff]
    %v912 = vld [vmem:[#allocation11 + $0x480] sm:$0xff]
    %v913 = vld [vmem:[#allocation11 + $0x488] sm:$0xff]
    %v914 = vld [vmem:[#allocation11 + $0x490] sm:$0xff]
    %v915 = vld [vmem:[#allocation11 + $0x498] sm:$0xff]
    %v916 = vld [vmem:[#allocation11 + $0x4a0] sm:$0xff]
    %v917 = vld [vmem:[#allocation11 + $0x4a8] sm:$0xff]
    %v918 = vld [vmem:[#allocation11 + $0x4b0] sm:$0xff]
    %v919 = vld [vmem:[#allocation11 + $0x4b8] sm:$0xff]
    %v920 = vld [vmem:[#allocation11 + $0x4c0] sm:$0xff]
    %v921 = vld [vmem:[#allocation11 + $0x4c8] sm:$0xff]
    %v922 = vld [vmem:[#allocation11 + $0x4d0] sm:$0xff]
    %v923 = vld [vmem:[#allocation11 + $0x4d8] sm:$0xff]
    %v924 = vld [vmem:[#allocation11 + $0x4e0] sm:$0xff]
    %v925 = vld [vmem:[#allocation11 + $0x4e8] sm:$0xff]
    %v926 = vld [vmem:[#allocation11 + $0x4f0] sm:$0xff]
    %v927 = vld [vmem:[#allocation11 + $0x4f8] sm:$0xff]
    %v928 = vld [vmem:[#allocation11 + $0x500] sm:$0xff]
    %v929 = vld [vmem:[#allocation11 + $0x508] sm:$0xff]
    %v930 = vld [vmem:[#allocation11 + $0x510] sm:$0xff]
    %v931 = vld [vmem:[#allocation11 + $0x518] sm:$0xff]
    %v932 = vld [vmem:[#allocation11 + $0x520] sm:$0xff]
    %v933 = vld [vmem:[#allocation11 + $0x528] sm:$0xff]
    %v934 = vld [vmem:[#allocation11 + $0x530] sm:$0xff]
    %v935 = vld [vmem:[#allocation11 + $0x538] sm:$0xff]
    %v936 = vld [vmem:[#allocation11 + $0x540] sm:$0xff]
    %v937 = vld [vmem:[#allocation11 + $0x548] sm:$0xff]
    %v938 = vld [vmem:[#allocation11 + $0x550] sm:$0xff]
    %v939 = vld [vmem:[#allocation11 + $0x558] sm:$0xff]
    %v940 = vld [vmem:[#allocation11 + $0x560] sm:$0xff]
    %v941 = vld [vmem:[#allocation11 + $0x568] sm:$0xff]
    %v942 = vld [vmem:[#allocation11 + $0x570] sm:$0xff]
    %v943 = vld [vmem:[#allocation11 + $0x578] sm:$0xff]
    %v944 = vld [vmem:[#allocation11 + $0x580] sm:$0xff]
    %v945 = vld [vmem:[#allocation11 + $0x588] sm:$0xff]
    %v946 = vld [vmem:[#allocation11 + $0x590] sm:$0xff]
    %v947 = vld [vmem:[#allocation11 + $0x598] sm:$0xff]
    %v948 = vld [vmem:[#allocation11 + $0x5a0] sm:$0xff]
    %v949 = vld [vmem:[#allocation11 + $0x5a8] sm:$0xff]
    %v950 = vld [vmem:[#allocation11 + $0x5b0] sm:$0xff]
    %v951 = vld [vmem:[#allocation11 + $0x5b8] sm:$0xff]
    %v952 = vld [vmem:[#allocation11 + $0x5c0] sm:$0xff]
    %v953 = vld [vmem:[#allocation11 + $0x5c8] sm:$0xff]
    %v954 = vld [vmem:[#allocation11 + $0x5d0] sm:$0xff]
    %v955 = vld [vmem:[#allocation11 + $0x5d8] sm:$0xff]
    %v956 = vld [vmem:[#allocation11 + $0x5e0] sm:$0xff]
    %v957 = vld [vmem:[#allocation11 + $0x5e8] sm:$0xff]
    %v958 = vld [vmem:[#allocation11 + $0x5f0] sm:$0xff]
    %v959 = vld [vmem:[#allocation11 + $0x5f8] sm:$0xff]
    %v960 = vld [vmem:[#allocation11 + $0x600] sm:$0xff]
    %v961 = vld [vmem:[#allocation11 + $0x608] sm:$0xff]
    %v962 = vld [vmem:[#allocation11 + $0x610] sm:$0xff]
    %v963 = vld [vmem:[#allocation11 + $0x618] sm:$0xff]
    %v964 = vld [vmem:[#allocation11 + $0x620] sm:$0xff]
    %v965 = vld [vmem:[#allocation11 + $0x628] sm:$0xff]
    %v966 = vld [vmem:[#allocation11 + $0x630] sm:$0xff]
    %v967 = vld [vmem:[#allocation11 + $0x638] sm:$0xff]
    %v968 = vld [vmem:[#allocation11 + $0x640] sm:$0xff]
    %v969 = vld [vmem:[#allocation11 + $0x648] sm:$0xff]
    %v970 = vld [vmem:[#allocation11 + $0x650] sm:$0xff]
    %v971 = vld [vmem:[#allocation11 + $0x658] sm:$0xff]
    %v972 = vld [vmem:[#allocation11 + $0x660] sm:$0xff]
    %v973 = vld [vmem:[#allocation11 + $0x668] sm:$0xff]
    %v974 = vld [vmem:[#allocation11 + $0x670] sm:$0xff]
    %v975 = vld [vmem:[#allocation11 + $0x678] sm:$0xff]
    %v976 = vld [vmem:[#allocation11 + $0x680] sm:$0xff]
    %v977 = vld [vmem:[#allocation11 + $0x688] sm:$0xff]
    %v978 = vld [vmem:[#allocation11 + $0x690] sm:$0xff]
    %v979 = vld [vmem:[#allocation11 + $0x698] sm:$0xff]
    %v980 = vld [vmem:[#allocation11 + $0x6a0] sm:$0xff]
    %v981 = vld [vmem:[#allocation11 + $0x6a8] sm:$0xff]
    %v982 = vld [vmem:[#allocation11 + $0x6b0] sm:$0xff]
    %v983 = vld [vmem:[#allocation11 + $0x6b8] sm:$0xff]
    %v984 = vld [vmem:[#allocation11 + $0x6c0] sm:$0xff]
    %v985 = vld [vmem:[#allocation11 + $0x6c8] sm:$0xff]
    %v986 = vld [vmem:[#allocation11 + $0x6d0] sm:$0xff]
    %v987 = vld [vmem:[#allocation11 + $0x6d8] sm:$0xff]
    %v988 = vld [vmem:[#allocation11 + $0x6e0] sm:$0xff]
    %v989 = vld [vmem:[#allocation11 + $0x6e8] sm:$0xff]
    %v990 = vld [vmem:[#allocation11 + $0x6f0] sm:$0xff]
    %v991 = vld [vmem:[#allocation11 + $0x6f8] sm:$0xff]
    %v992 = vld [vmem:[#allocation11 + $0x700] sm:$0xff]
    %v993 = vld [vmem:[#allocation11 + $0x708] sm:$0xff]
    %v994 = vld [vmem:[#allocation11 + $0x710] sm:$0xff]
    %v995 = vld [vmem:[#allocation11 + $0x718] sm:$0xff]
    %v996 = vld [vmem:[#allocation11 + $0x720] sm:$0xff]
    %v997 = vld [vmem:[#allocation11 + $0x728] sm:$0xff]
    %v998 = vld [vmem:[#allocation11 + $0x730] sm:$0xff]
    %v999 = vld [vmem:[#allocation11 + $0x738] sm:$0xff]
    %v1000 = vld [vmem:[#allocation11 + $0x740] sm:$0xff]
    %v1001 = vld [vmem:[#allocation11 + $0x748] sm:$0xff]
    %v1002 = vld [vmem:[#allocation11 + $0x750] sm:$0xff]
    %v1003 = vld [vmem:[#allocation11 + $0x758] sm:$0xff]
    %v1004 = vld [vmem:[#allocation11 + $0x760] sm:$0xff]
    %v1005 = vld [vmem:[#allocation11 + $0x768] sm:$0xff]
    %v1006 = vld [vmem:[#allocation11 + $0x770] sm:$0xff]
    %v1007 = vld [vmem:[#allocation11 + $0x778] sm:$0xff]
    %v1008 = vld [vmem:[#allocation11 + $0x780] sm:$0xff]
    %v1009 = vld [vmem:[#allocation11 + $0x788] sm:$0xff]
    %v1010 = vld [vmem:[#allocation11 + $0x790] sm:$0xff]
    %v1011 = vld [vmem:[#allocation11 + $0x798] sm:$0xff]
    %v1012 = vld [vmem:[#allocation11 + $0x7a0] sm:$0xff]
    %v1013 = vld [vmem:[#allocation11 + $0x7a8] sm:$0xff]
    %v1014 = vld [vmem:[#allocation11 + $0x7b0] sm:$0xff]
    %v1015 = vld [vmem:[#allocation11 + $0x7b8] sm:$0xff]
    %v1016 = vld [vmem:[#allocation11 + $0x7c0] sm:$0xff]
    %v1017 = vld [vmem:[#allocation11 + $0x7c8] sm:$0xff]
    %v1018 = vld [vmem:[#allocation11 + $0x7d0] sm:$0xff]
    %v1019 = vld [vmem:[#allocation11 + $0x7d8] sm:$0xff]
    %v1020 = vld [vmem:[#allocation11 + $0x7e0] sm:$0xff]
    %v1021 = vld [vmem:[#allocation11 + $0x7e8] sm:$0xff]
    %v1022 = vld [vmem:[#allocation11 + $0x7f0] sm:$0xff]
    %v1023 = vld [vmem:[#allocation11 + $0x7f8] sm:$0xff]
    %v1024 = vld [vmem:[#allocation13] sm:$0xff]
    %v1026 = vperm.slane %v1024, 0
    %v1027 = vperm.slane %v1024, 1
    %v1028 = vperm.slane %v1024, 2
    %v1029 = vperm.slane %v1024, 3
    %v1030 = vperm.slane %v1024, 4
    %v1031 = vperm.slane %v1024, 5
    %v1032 = vperm.slane %v1024, 6
    %v1033 = vperm.slane %v1024, 7
    %v1298 = vunpack.c.l.b16 %v768
    %v1299 = vunpack.c.h.b16 %v768
    %v1300 = vunpack.c.l.b16 %v769
    %v1301 = vunpack.c.h.b16 %v769
    %v1302 = vunpack.c.l.b16 %v770
    %v1303 = vunpack.c.h.b16 %v770
    %v1304 = vunpack.c.l.b16 %v771
    %v1305 = vunpack.c.h.b16 %v771
    %v1306 = vunpack.c.l.b16 %v772
    %v1307 = vunpack.c.h.b16 %v772
    %v1308 = vunpack.c.l.b16 %v773
    %v1309 = vunpack.c.h.b16 %v773
    %v1310 = vunpack.c.l.b16 %v774
    %v1311 = vunpack.c.h.b16 %v774
    %v1312 = vunpack.c.l.b16 %v775
    %v1313 = vunpack.c.h.b16 %v775
    %v1314 = vunpack.c.l.b16 %v776
    %v1315 = vunpack.c.h.b16 %v776
    %v1316 = vunpack.c.l.b16 %v777
    %v1317 = vunpack.c.h.b16 %v777
    %v1318 = vunpack.c.l.b16 %v778
    %v1319 = vunpack.c.h.b16 %v778
    %v1320 = vunpack.c.l.b16 %v779
    %v1321 = vunpack.c.h.b16 %v779
    %v1322 = vunpack.c.l.b16 %v780
    %v1323 = vunpack.c.h.b16 %v780
    %v1324 = vunpack.c.l.b16 %v781
    %v1325 = vunpack.c.h.b16 %v781
    %v1326 = vunpack.c.l.b16 %v782
    %v1327 = vunpack.c.h.b16 %v782
    %v1328 = vunpack.c.l.b16 %v783
    %v1329 = vunpack.c.h.b16 %v783
    %v1330 = vunpack.c.l.b16 %v784
    %v1331 = vunpack.c.h.b16 %v784
    %v1332 = vunpack.c.l.b16 %v785
    %v1333 = vunpack.c.h.b16 %v785
    %v1334 = vunpack.c.l.b16 %v786
    %v1335 = vunpack.c.h.b16 %v786
    %v1336 = vunpack.c.l.b16 %v787
    %v1337 = vunpack.c.h.b16 %v787
    %v1338 = vunpack.c.l.b16 %v788
    %v1339 = vunpack.c.h.b16 %v788
    %v1340 = vunpack.c.l.b16 %v789
    %v1341 = vunpack.c.h.b16 %v789
    %v1342 = vunpack.c.l.b16 %v790
    %v1343 = vunpack.c.h.b16 %v790
    %v1344 = vunpack.c.l.b16 %v791
    %v1345 = vunpack.c.h.b16 %v791
    %v1346 = vunpack.c.l.b16 %v792
    %v1347 = vunpack.c.h.b16 %v792
    %v1348 = vunpack.c.l.b16 %v793
    %v1349 = vunpack.c.h.b16 %v793
    %v1350 = vunpack.c.l.b16 %v794
    %v1351 = vunpack.c.h.b16 %v794
    %v1352 = vunpack.c.l.b16 %v795
    %v1353 = vunpack.c.h.b16 %v795
    %v1354 = vunpack.c.l.b16 %v796
    %v1355 = vunpack.c.h.b16 %v796
    %v1356 = vunpack.c.l.b16 %v797
    %v1357 = vunpack.c.h.b16 %v797
    %v1358 = vunpack.c.l.b16 %v798
    %v1359 = vunpack.c.h.b16 %v798
    %v1360 = vunpack.c.l.b16 %v799
    %v1361 = vunpack.c.h.b16 %v799
    %v1362 = vunpack.c.l.b16 %v800
    %v1363 = vunpack.c.h.b16 %v800
    %v1364 = vunpack.c.l.b16 %v801
    %v1365 = vunpack.c.h.b16 %v801
    %v1366 = vunpack.c.l.b16 %v802
    %v1367 = vunpack.c.h.b16 %v802
    %v1368 = vunpack.c.l.b16 %v803
    %v1369 = vunpack.c.h.b16 %v803
    %v1370 = vunpack.c.l.b16 %v804
    %v1371 = vunpack.c.h.b16 %v804
    %v1372 = vunpack.c.l.b16 %v805
    %v1373 = vunpack.c.h.b16 %v805
    %v1374 = vunpack.c.l.b16 %v806
    %v1375 = vunpack.c.h.b16 %v806
    %v1376 = vunpack.c.l.b16 %v807
    %v1377 = vunpack.c.h.b16 %v807
    %v1378 = vunpack.c.l.b16 %v808
    %v1379 = vunpack.c.h.b16 %v808
    %v1380 = vunpack.c.l.b16 %v809
    %v1381 = vunpack.c.h.b16 %v809
    %v1382 = vunpack.c.l.b16 %v810
    %v1383 = vunpack.c.h.b16 %v810
    %v1384 = vunpack.c.l.b16 %v811
    %v1385 = vunpack.c.h.b16 %v811
    %v1386 = vunpack.c.l.b16 %v812
    %v1387 = vunpack.c.h.b16 %v812
    %v1388 = vunpack.c.l.b16 %v813
    %v1389 = vunpack.c.h.b16 %v813
    %v1390 = vunpack.c.l.b16 %v814
    %v1391 = vunpack.c.h.b16 %v814
    %v1392 = vunpack.c.l.b16 %v815
    %v1393 = vunpack.c.h.b16 %v815
    %v1394 = vunpack.c.l.b16 %v816
    %v1395 = vunpack.c.h.b16 %v816
    %v1396 = vunpack.c.l.b16 %v817
    %v1397 = vunpack.c.h.b16 %v817
    %v1398 = vunpack.c.l.b16 %v818
    %v1399 = vunpack.c.h.b16 %v818
    %v1400 = vunpack.c.l.b16 %v819
    %v1401 = vunpack.c.h.b16 %v819
    %v1402 = vunpack.c.l.b16 %v820
    %v1403 = vunpack.c.h.b16 %v820
    %v1404 = vunpack.c.l.b16 %v821
    %v1405 = vunpack.c.h.b16 %v821
    %v1406 = vunpack.c.l.b16 %v822
    %v1407 = vunpack.c.h.b16 %v822
    %v1408 = vunpack.c.l.b16 %v823
    %v1409 = vunpack.c.h.b16 %v823
    %v1410 = vunpack.c.l.b16 %v824
    %v1411 = vunpack.c.h.b16 %v824
    %v1412 = vunpack.c.l.b16 %v825
    %v1413 = vunpack.c.h.b16 %v825
    %v1414 = vunpack.c.l.b16 %v826
    %v1415 = vunpack.c.h.b16 %v826
    %v1416 = vunpack.c.l.b16 %v827
    %v1417 = vunpack.c.h.b16 %v827
    %v1418 = vunpack.c.l.b16 %v828
    %v1419 = vunpack.c.h.b16 %v828
    %v1420 = vunpack.c.l.b16 %v829
    %v1421 = vunpack.c.h.b16 %v829
    %v1422 = vunpack.c.l.b16 %v830
    %v1423 = vunpack.c.h.b16 %v830
    %v1424 = vunpack.c.l.b16 %v831
    %v1425 = vunpack.c.h.b16 %v831
    %v1426 = vunpack.c.l.b16 %v832
    %v1427 = vunpack.c.h.b16 %v832
    %v1428 = vunpack.c.l.b16 %v833
    %v1429 = vunpack.c.h.b16 %v833
    %v1430 = vunpack.c.l.b16 %v834
    %v1431 = vunpack.c.h.b16 %v834
    %v1432 = vunpack.c.l.b16 %v835
    %v1433 = vunpack.c.h.b16 %v835
    %v1434 = vunpack.c.l.b16 %v836
    %v1435 = vunpack.c.h.b16 %v836
    %v1436 = vunpack.c.l.b16 %v837
    %v1437 = vunpack.c.h.b16 %v837
    %v1438 = vunpack.c.l.b16 %v838
    %v1439 = vunpack.c.h.b16 %v838
    %v1440 = vunpack.c.l.b16 %v839
    %v1441 = vunpack.c.h.b16 %v839
    %v1442 = vunpack.c.l.b16 %v840
    %v1443 = vunpack.c.h.b16 %v840
    %v1444 = vunpack.c.l.b16 %v841
    %v1445 = vunpack.c.h.b16 %v841
    %v1446 = vunpack.c.l.b16 %v842
    %v1447 = vunpack.c.h.b16 %v842
    %v1448 = vunpack.c.l.b16 %v843
    %v1449 = vunpack.c.h.b16 %v843
    %v1450 = vunpack.c.l.b16 %v844
    %v1451 = vunpack.c.h.b16 %v844
    %v1452 = vunpack.c.l.b16 %v845
    %v1453 = vunpack.c.h.b16 %v845
    %v1454 = vunpack.c.l.b16 %v846
    %v1455 = vunpack.c.h.b16 %v846
    %v1456 = vunpack.c.l.b16 %v847
    %v1457 = vunpack.c.h.b16 %v847
    %v1458 = vunpack.c.l.b16 %v848
    %v1459 = vunpack.c.h.b16 %v848
    %v1460 = vunpack.c.l.b16 %v849
    %v1461 = vunpack.c.h.b16 %v849
    %v1462 = vunpack.c.l.b16 %v850
    %v1463 = vunpack.c.h.b16 %v850
    %v1464 = vunpack.c.l.b16 %v851
    %v1465 = vunpack.c.h.b16 %v851
    %v1466 = vunpack.c.l.b16 %v852
    %v1467 = vunpack.c.h.b16 %v852
    %v1468 = vunpack.c.l.b16 %v853
    %v1469 = vunpack.c.h.b16 %v853
    %v1470 = vunpack.c.l.b16 %v854
    %v1471 = vunpack.c.h.b16 %v854
    %v1472 = vunpack.c.l.b16 %v855
    %v1473 = vunpack.c.h.b16 %v855
    %v1474 = vunpack.c.l.b16 %v856
    %v1475 = vunpack.c.h.b16 %v856
    %v1476 = vunpack.c.l.b16 %v857
    %v1477 = vunpack.c.h.b16 %v857
    %v1478 = vunpack.c.l.b16 %v858
    %v1479 = vunpack.c.h.b16 %v858
    %v1480 = vunpack.c.l.b16 %v859
    %v1481 = vunpack.c.h.b16 %v859
    %v1482 = vunpack.c.l.b16 %v860
    %v1483 = vunpack.c.h.b16 %v860
    %v1484 = vunpack.c.l.b16 %v861
    %v1485 = vunpack.c.h.b16 %v861
    %v1486 = vunpack.c.l.b16 %v862
    %v1487 = vunpack.c.h.b16 %v862
    %v1488 = vunpack.c.l.b16 %v863
    %v1489 = vunpack.c.h.b16 %v863
    %v1490 = vunpack.c.l.b16 %v864
    %v1491 = vunpack.c.h.b16 %v864
    %v1492 = vunpack.c.l.b16 %v865
    %v1493 = vunpack.c.h.b16 %v865
    %v1494 = vunpack.c.l.b16 %v866
    %v1495 = vunpack.c.h.b16 %v866
    %v1496 = vunpack.c.l.b16 %v867
    %v1497 = vunpack.c.h.b16 %v867
    %v1498 = vunpack.c.l.b16 %v868
    %v1499 = vunpack.c.h.b16 %v868
    %v1500 = vunpack.c.l.b16 %v869
    %v1501 = vunpack.c.h.b16 %v869
    %v1502 = vunpack.c.l.b16 %v870
    %v1503 = vunpack.c.h.b16 %v870
    %v1504 = vunpack.c.l.b16 %v871
    %v1505 = vunpack.c.h.b16 %v871
    %v1506 = vunpack.c.l.b16 %v872
    %v1507 = vunpack.c.h.b16 %v872
    %v1508 = vunpack.c.l.b16 %v873
    %v1509 = vunpack.c.h.b16 %v873
    %v1510 = vunpack.c.l.b16 %v874
    %v1511 = vunpack.c.h.b16 %v874
    %v1512 = vunpack.c.l.b16 %v875
    %v1513 = vunpack.c.h.b16 %v875
    %v1514 = vunpack.c.l.b16 %v876
    %v1515 = vunpack.c.h.b16 %v876
    %v1516 = vunpack.c.l.b16 %v877
    %v1517 = vunpack.c.h.b16 %v877
    %v1518 = vunpack.c.l.b16 %v878
    %v1519 = vunpack.c.h.b16 %v878
    %v1520 = vunpack.c.l.b16 %v879
    %v1521 = vunpack.c.h.b16 %v879
    %v1522 = vunpack.c.l.b16 %v880
    %v1523 = vunpack.c.h.b16 %v880
    %v1524 = vunpack.c.l.b16 %v881
    %v1525 = vunpack.c.h.b16 %v881
    %v1526 = vunpack.c.l.b16 %v882
    %v1527 = vunpack.c.h.b16 %v882
    %v1528 = vunpack.c.l.b16 %v883
    %v1529 = vunpack.c.h.b16 %v883
    %v1530 = vunpack.c.l.b16 %v884
    %v1531 = vunpack.c.h.b16 %v884
    %v1532 = vunpack.c.l.b16 %v885
    %v1533 = vunpack.c.h.b16 %v885
    %v1534 = vunpack.c.l.b16 %v886
    %v1535 = vunpack.c.h.b16 %v886
    %v1536 = vunpack.c.l.b16 %v887
    %v1537 = vunpack.c.h.b16 %v887
    %v1538 = vunpack.c.l.b16 %v888
    %v1539 = vunpack.c.h.b16 %v888
    %v1540 = vunpack.c.l.b16 %v889
    %v1541 = vunpack.c.h.b16 %v889
    %v1542 = vunpack.c.l.b16 %v890
    %v1543 = vunpack.c.h.b16 %v890
    %v1544 = vunpack.c.l.b16 %v891
    %v1545 = vunpack.c.h.b16 %v891
    %v1546 = vunpack.c.l.b16 %v892
    %v1547 = vunpack.c.h.b16 %v892
    %v1548 = vunpack.c.l.b16 %v893
    %v1549 = vunpack.c.h.b16 %v893
    %v1550 = vunpack.c.l.b16 %v894
    %v1551 = vunpack.c.h.b16 %v894
    %v1552 = vunpack.c.l.b16 %v895
    %v1553 = vunpack.c.h.b16 %v895
    %v1554 = vunpack.c.l.b16 %v896
    %v1555 = vunpack.c.h.b16 %v896
    %v1556 = vunpack.c.l.b16 %v897
    %v1557 = vunpack.c.h.b16 %v897
    %v1558 = vunpack.c.l.b16 %v898
    %v1559 = vunpack.c.h.b16 %v898
    %v1560 = vunpack.c.l.b16 %v899
    %v1561 = vunpack.c.h.b16 %v899
    %v1562 = vunpack.c.l.b16 %v900
    %v1563 = vunpack.c.h.b16 %v900
    %v1564 = vunpack.c.l.b16 %v901
    %v1565 = vunpack.c.h.b16 %v901
    %v1566 = vunpack.c.l.b16 %v902
    %v1567 = vunpack.c.h.b16 %v902
    %v1568 = vunpack.c.l.b16 %v903
    %v1569 = vunpack.c.h.b16 %v903
    %v1570 = vunpack.c.l.b16 %v904
    %v1571 = vunpack.c.h.b16 %v904
    %v1572 = vunpack.c.l.b16 %v905
    %v1573 = vunpack.c.h.b16 %v905
    %v1574 = vunpack.c.l.b16 %v906
    %v1575 = vunpack.c.h.b16 %v906
    %v1576 = vunpack.c.l.b16 %v907
    %v1577 = vunpack.c.h.b16 %v907
    %v1578 = vunpack.c.l.b16 %v908
    %v1579 = vunpack.c.h.b16 %v908
    %v1580 = vunpack.c.l.b16 %v909
    %v1581 = vunpack.c.h.b16 %v909
    %v1582 = vunpack.c.l.b16 %v910
    %v1583 = vunpack.c.h.b16 %v910
    %v1584 = vunpack.c.l.b16 %v911
    %v1585 = vunpack.c.h.b16 %v911
    %v1586 = vunpack.c.l.b16 %v912
    %v1587 = vunpack.c.h.b16 %v912
    %v1588 = vunpack.c.l.b16 %v913
    %v1589 = vunpack.c.h.b16 %v913
    %v1590 = vunpack.c.l.b16 %v914
    %v1591 = vunpack.c.h.b16 %v914
    %v1592 = vunpack.c.l.b16 %v915
    %v1593 = vunpack.c.h.b16 %v915
    %v1594 = vunpack.c.l.b16 %v916
    %v1595 = vunpack.c.h.b16 %v916
    %v1596 = vunpack.c.l.b16 %v917
    %v1597 = vunpack.c.h.b16 %v917
    %v1598 = vunpack.c.l.b16 %v918
    %v1599 = vunpack.c.h.b16 %v918
    %v1600 = vunpack.c.l.b16 %v919
    %v1601 = vunpack.c.h.b16 %v919
    %v1602 = vunpack.c.l.b16 %v920
    %v1603 = vunpack.c.h.b16 %v920
    %v1604 = vunpack.c.l.b16 %v921
    %v1605 = vunpack.c.h.b16 %v921
    %v1606 = vunpack.c.l.b16 %v922
    %v1607 = vunpack.c.h.b16 %v922
    %v1608 = vunpack.c.l.b16 %v923
    %v1609 = vunpack.c.h.b16 %v923
    %v1610 = vunpack.c.l.b16 %v924
    %v1611 = vunpack.c.h.b16 %v924
    %v1612 = vunpack.c.l.b16 %v925
    %v1613 = vunpack.c.h.b16 %v925
    %v1614 = vunpack.c.l.b16 %v926
    %v1615 = vunpack.c.h.b16 %v926
    %v1616 = vunpack.c.l.b16 %v927
    %v1617 = vunpack.c.h.b16 %v927
    %v1618 = vunpack.c.l.b16 %v928
    %v1619 = vunpack.c.h.b16 %v928
    %v1620 = vunpack.c.l.b16 %v929
    %v1621 = vunpack.c.h.b16 %v929
    %v1622 = vunpack.c.l.b16 %v930
    %v1623 = vunpack.c.h.b16 %v930
    %v1624 = vunpack.c.l.b16 %v931
    %v1625 = vunpack.c.h.b16 %v931
    %v1626 = vunpack.c.l.b16 %v932
    %v1627 = vunpack.c.h.b16 %v932
    %v1628 = vunpack.c.l.b16 %v933
    %v1629 = vunpack.c.h.b16 %v933
    %v1630 = vunpack.c.l.b16 %v934
    %v1631 = vunpack.c.h.b16 %v934
    %v1632 = vunpack.c.l.b16 %v935
    %v1633 = vunpack.c.h.b16 %v935
    %v1634 = vunpack.c.l.b16 %v936
    %v1635 = vunpack.c.h.b16 %v936
    %v1636 = vunpack.c.l.b16 %v937
    %v1637 = vunpack.c.h.b16 %v937
    %v1638 = vunpack.c.l.b16 %v938
    %v1639 = vunpack.c.h.b16 %v938
    %v1640 = vunpack.c.l.b16 %v939
    %v1641 = vunpack.c.h.b16 %v939
    %v1642 = vunpack.c.l.b16 %v940
    %v1643 = vunpack.c.h.b16 %v940
    %v1644 = vunpack.c.l.b16 %v941
    %v1645 = vunpack.c.h.b16 %v941
    %v1646 = vunpack.c.l.b16 %v942
    %v1647 = vunpack.c.h.b16 %v942
    %v1648 = vunpack.c.l.b16 %v943
    %v1649 = vunpack.c.h.b16 %v943
    %v1650 = vunpack.c.l.b16 %v944
    %v1651 = vunpack.c.h.b16 %v944
    %v1652 = vunpack.c.l.b16 %v945
    %v1653 = vunpack.c.h.b16 %v945
    %v1654 = vunpack.c.l.b16 %v946
    %v1655 = vunpack.c.h.b16 %v946
    %v1656 = vunpack.c.l.b16 %v947
    %v1657 = vunpack.c.h.b16 %v947
    %v1658 = vunpack.c.l.b16 %v948
    %v1659 = vunpack.c.h.b16 %v948
    %v1660 = vunpack.c.l.b16 %v949
    %v1661 = vunpack.c.h.b16 %v949
    %v1662 = vunpack.c.l.b16 %v950
    %v1663 = vunpack.c.h.b16 %v950
    %v1664 = vunpack.c.l.b16 %v951
    %v1665 = vunpack.c.h.b16 %v951
    %v1666 = vunpack.c.l.b16 %v952
    %v1667 = vunpack.c.h.b16 %v952
    %v1668 = vunpack.c.l.b16 %v953
    %v1669 = vunpack.c.h.b16 %v953
    %v1670 = vunpack.c.l.b16 %v954
    %v1671 = vunpack.c.h.b16 %v954
    %v1672 = vunpack.c.l.b16 %v955
    %v1673 = vunpack.c.h.b16 %v955
    %v1674 = vunpack.c.l.b16 %v956
    %v1675 = vunpack.c.h.b16 %v956
    %v1676 = vunpack.c.l.b16 %v957
    %v1677 = vunpack.c.h.b16 %v957
    %v1678 = vunpack.c.l.b16 %v958
    %v1679 = vunpack.c.h.b16 %v958
    %v1680 = vunpack.c.l.b16 %v959
    %v1681 = vunpack.c.h.b16 %v959
    %v1682 = vunpack.c.l.b16 %v960
    %v1683 = vunpack.c.h.b16 %v960
    %v1684 = vunpack.c.l.b16 %v961
    %v1685 = vunpack.c.h.b16 %v961
    %v1686 = vunpack.c.l.b16 %v962
    %v1687 = vunpack.c.h.b16 %v962
    %v1688 = vunpack.c.l.b16 %v963
    %v1689 = vunpack.c.h.b16 %v963
    %v1690 = vunpack.c.l.b16 %v964
    %v1691 = vunpack.c.h.b16 %v964
    %v1692 = vunpack.c.l.b16 %v965
    %v1693 = vunpack.c.h.b16 %v965
    %v1694 = vunpack.c.l.b16 %v966
    %v1695 = vunpack.c.h.b16 %v966
    %v1696 = vunpack.c.l.b16 %v967
    %v1697 = vunpack.c.h.b16 %v967
    %v1698 = vunpack.c.l.b16 %v968
    %v1699 = vunpack.c.h.b16 %v968
    %v1700 = vunpack.c.l.b16 %v969
    %v1701 = vunpack.c.h.b16 %v969
    %v1702 = vunpack.c.l.b16 %v970
    %v1703 = vunpack.c.h.b16 %v970
    %v1704 = vunpack.c.l.b16 %v971
    %v1705 = vunpack.c.h.b16 %v971
    %v1706 = vunpack.c.l.b16 %v972
    %v1707 = vunpack.c.h.b16 %v972
    %v1708 = vunpack.c.l.b16 %v973
    %v1709 = vunpack.c.h.b16 %v973
    %v1710 = vunpack.c.l.b16 %v974
    %v1711 = vunpack.c.h.b16 %v974
    %v1712 = vunpack.c.l.b16 %v975
    %v1713 = vunpack.c.h.b16 %v975
    %v1714 = vunpack.c.l.b16 %v976
    %v1715 = vunpack.c.h.b16 %v976
    %v1716 = vunpack.c.l.b16 %v977
    %v1717 = vunpack.c.h.b16 %v977
    %v1718 = vunpack.c.l.b16 %v978
    %v1719 = vunpack.c.h.b16 %v978
    %v1720 = vunpack.c.l.b16 %v979
    %v1721 = vunpack.c.h.b16 %v979
    %v1722 = vunpack.c.l.b16 %v980
    %v1723 = vunpack.c.h.b16 %v980
    %v1724 = vunpack.c.l.b16 %v981
    %v1725 = vunpack.c.h.b16 %v981
    %v1726 = vunpack.c.l.b16 %v982
    %v1727 = vunpack.c.h.b16 %v982
    %v1728 = vunpack.c.l.b16 %v983
    %v1729 = vunpack.c.h.b16 %v983
    %v1730 = vunpack.c.l.b16 %v984
    %v1731 = vunpack.c.h.b16 %v984
    %v1732 = vunpack.c.l.b16 %v985
    %v1733 = vunpack.c.h.b16 %v985
    %v1734 = vunpack.c.l.b16 %v986
    %v1735 = vunpack.c.h.b16 %v986
    %v1736 = vunpack.c.l.b16 %v987
    %v1737 = vunpack.c.h.b16 %v987
    %v1738 = vunpack.c.l.b16 %v988
    %v1739 = vunpack.c.h.b16 %v988
    %v1740 = vunpack.c.l.b16 %v989
    %v1741 = vunpack.c.h.b16 %v989
    %v1742 = vunpack.c.l.b16 %v990
    %v1743 = vunpack.c.h.b16 %v990
    %v1744 = vunpack.c.l.b16 %v991
    %v1745 = vunpack.c.h.b16 %v991
    %v1746 = vunpack.c.l.b16 %v992
    %v1747 = vunpack.c.h.b16 %v992
    %v1748 = vunpack.c.l.b16 %v993
    %v1749 = vunpack.c.h.b16 %v993
    %v1750 = vunpack.c.l.b16 %v994
    %v1751 = vunpack.c.h.b16 %v994
    %v1752 = vunpack.c.l.b16 %v995
    %v1753 = vunpack.c.h.b16 %v995
    %v1754 = vunpack.c.l.b16 %v996
    %v1755 = vunpack.c.h.b16 %v996
    %v1756 = vunpack.c.l.b16 %v997
    %v1757 = vunpack.c.h.b16 %v997
    %v1758 = vunpack.c.l.b16 %v998
    %v1759 = vunpack.c.h.b16 %v998
    %v1760 = vunpack.c.l.b16 %v999
    %v1761 = vunpack.c.h.b16 %v999
    %v1762 = vunpack.c.l.b16 %v1000
    %v1763 = vunpack.c.h.b16 %v1000
    %v1764 = vunpack.c.l.b16 %v1001
    %v1765 = vunpack.c.h.b16 %v1001
    %v1766 = vunpack.c.l.b16 %v1002
    %v1767 = vunpack.c.h.b16 %v1002
    %v1768 = vunpack.c.l.b16 %v1003
    %v1769 = vunpack.c.h.b16 %v1003
    %v1770 = vunpack.c.l.b16 %v1004
    %v1771 = vunpack.c.h.b16 %v1004
    %v1772 = vunpack.c.l.b16 %v1005
    %v1773 = vunpack.c.h.b16 %v1005
    %v1774 = vunpack.c.l.b16 %v1006
    %v1775 = vunpack.c.h.b16 %v1006
    %v1776 = vunpack.c.l.b16 %v1007
    %v1777 = vunpack.c.h.b16 %v1007
    %v1778 = vunpack.c.l.b16 %v1008
    %v1779 = vunpack.c.h.b16 %v1008
    %v1780 = vunpack.c.l.b16 %v1009
    %v1781 = vunpack.c.h.b16 %v1009
    %v1782 = vunpack.c.l.b16 %v1010
    %v1783 = vunpack.c.h.b16 %v1010
    %v1784 = vunpack.c.l.b16 %v1011
    %v1785 = vunpack.c.h.b16 %v1011
    %v1786 = vunpack.c.l.b16 %v1012
    %v1787 = vunpack.c.h.b16 %v1012
    %v1788 = vunpack.c.l.b16 %v1013
    %v1789 = vunpack.c.h.b16 %v1013
    %v1790 = vunpack.c.l.b16 %v1014
    %v1791 = vunpack.c.h.b16 %v1014
    %v1792 = vunpack.c.l.b16 %v1015
    %v1793 = vunpack.c.h.b16 %v1015
    %v1794 = vunpack.c.l.b16 %v1016
    %v1795 = vunpack.c.h.b16 %v1016
    %v1796 = vunpack.c.l.b16 %v1017
    %v1797 = vunpack.c.h.b16 %v1017
    %v1798 = vunpack.c.l.b16 %v1018
    %v1799 = vunpack.c.h.b16 %v1018
    %v1800 = vunpack.c.l.b16 %v1019
    %v1801 = vunpack.c.h.b16 %v1019
    %v1802 = vunpack.c.l.b16 %v1020
    %v1803 = vunpack.c.h.b16 %v1020
    %v1804 = vunpack.c.l.b16 %v1021
    %v1805 = vunpack.c.h.b16 %v1021
    %v1806 = vunpack.c.l.b16 %v1022
    %v1807 = vunpack.c.h.b16 %v1022
    %v1808 = vunpack.c.l.b16 %v1023
    %v1809 = vunpack.c.h.b16 %v1023
    %v1810 = vpack.c.b16 %v1306, %v1298
    %v1811 = vpack.c.b16 %v1307, %v1299
    %v1812 = vpack.c.b16 %v1308, %v1300
    %v1813 = vpack.c.b16 %v1309, %v1301
    %v1814 = vpack.c.b16 %v1310, %v1302
    %v1815 = vpack.c.b16 %v1311, %v1303
    %v1816 = vpack.c.b16 %v1312, %v1304
    %v1817 = vpack.c.b16 %v1313, %v1305
    %v1818 = vpack.c.b16 %v1322, %v1314
    %v1819 = vpack.c.b16 %v1323, %v1315
    %v1820 = vpack.c.b16 %v1324, %v1316
    %v1821 = vpack.c.b16 %v1325, %v1317
    %v1822 = vpack.c.b16 %v1326, %v1318
    %v1823 = vpack.c.b16 %v1327, %v1319
    %v1824 = vpack.c.b16 %v1328, %v1320
    %v1825 = vpack.c.b16 %v1329, %v1321
    %v1826 = vpack.c.b16 %v1338, %v1330
    %v1827 = vpack.c.b16 %v1339, %v1331
    %v1828 = vpack.c.b16 %v1340, %v1332
    %v1829 = vpack.c.b16 %v1341, %v1333
    %v1830 = vpack.c.b16 %v1342, %v1334
    %v1831 = vpack.c.b16 %v1343, %v1335
    %v1832 = vpack.c.b16 %v1344, %v1336
    %v1833 = vpack.c.b16 %v1345, %v1337
    %v1834 = vpack.c.b16 %v1354, %v1346
    %v1835 = vpack.c.b16 %v1355, %v1347
    %v1836 = vpack.c.b16 %v1356, %v1348
    %v1837 = vpack.c.b16 %v1357, %v1349
    %v1838 = vpack.c.b16 %v1358, %v1350
    %v1839 = vpack.c.b16 %v1359, %v1351
    %v1840 = vpack.c.b16 %v1360, %v1352
    %v1841 = vpack.c.b16 %v1361, %v1353
    %v1842 = vpack.c.b16 %v1370, %v1362
    %v1843 = vpack.c.b16 %v1371, %v1363
    %v1844 = vpack.c.b16 %v1372, %v1364
    %v1845 = vpack.c.b16 %v1373, %v1365
    %v1846 = vpack.c.b16 %v1374, %v1366
    %v1847 = vpack.c.b16 %v1375, %v1367
    %v1848 = vpack.c.b16 %v1376, %v1368
    %v1849 = vpack.c.b16 %v1377, %v1369
    %v1850 = vpack.c.b16 %v1386, %v1378
    %v1851 = vpack.c.b16 %v1387, %v1379
    %v1852 = vpack.c.b16 %v1388, %v1380
    %v1853 = vpack.c.b16 %v1389, %v1381
    %v1854 = vpack.c.b16 %v1390, %v1382
    %v1855 = vpack.c.b16 %v1391, %v1383
    %v1856 = vpack.c.b16 %v1392, %v1384
    %v1857 = vpack.c.b16 %v1393, %v1385
    %v1858 = vpack.c.b16 %v1402, %v1394
    %v1859 = vpack.c.b16 %v1403, %v1395
    %v1860 = vpack.c.b16 %v1404, %v1396
    %v1861 = vpack.c.b16 %v1405, %v1397
    %v1862 = vpack.c.b16 %v1406, %v1398
    %v1863 = vpack.c.b16 %v1407, %v1399
    %v1864 = vpack.c.b16 %v1408, %v1400
    %v1865 = vpack.c.b16 %v1409, %v1401
    %v1866 = vpack.c.b16 %v1418, %v1410
    %v1867 = vpack.c.b16 %v1419, %v1411
    %v1868 = vpack.c.b16 %v1420, %v1412
    %v1869 = vpack.c.b16 %v1421, %v1413
    %v1870 = vpack.c.b16 %v1422, %v1414
    %v1871 = vpack.c.b16 %v1423, %v1415
    %v1872 = vpack.c.b16 %v1424, %v1416
    %v1873 = vpack.c.b16 %v1425, %v1417
    %v1874 = vpack.c.b16 %v1434, %v1426
    %v1875 = vpack.c.b16 %v1435, %v1427
    %v1876 = vpack.c.b16 %v1436, %v1428
    %v1877 = vpack.c.b16 %v1437, %v1429
    %v1878 = vpack.c.b16 %v1438, %v1430
    %v1879 = vpack.c.b16 %v1439, %v1431
    %v1880 = vpack.c.b16 %v1440, %v1432
    %v1881 = vpack.c.b16 %v1441, %v1433
    %v1882 = vpack.c.b16 %v1450, %v1442
    %v1883 = vpack.c.b16 %v1451, %v1443
    %v1884 = vpack.c.b16 %v1452, %v1444
    %v1885 = vpack.c.b16 %v1453, %v1445
    %v1886 = vpack.c.b16 %v1454, %v1446
    %v1887 = vpack.c.b16 %v1455, %v1447
    %v1888 = vpack.c.b16 %v1456, %v1448
    %v1889 = vpack.c.b16 %v1457, %v1449
    %v1890 = vpack.c.b16 %v1466, %v1458
    %v1891 = vpack.c.b16 %v1467, %v1459
    %v1892 = vpack.c.b16 %v1468, %v1460
    %v1893 = vpack.c.b16 %v1469, %v1461
    %v1894 = vpack.c.b16 %v1470, %v1462
    %v1895 = vpack.c.b16 %v1471, %v1463
    %v1896 = vpack.c.b16 %v1472, %v1464
    %v1897 = vpack.c.b16 %v1473, %v1465
    %v1898 = vpack.c.b16 %v1482, %v1474
    %v1899 = vpack.c.b16 %v1483, %v1475
    %v1900 = vpack.c.b16 %v1484, %v1476
    %v1901 = vpack.c.b16 %v1485, %v1477
    %v1902 = vpack.c.b16 %v1486, %v1478
    %v1903 = vpack.c.b16 %v1487, %v1479
    %v1904 = vpack.c.b16 %v1488, %v1480
    %v1905 = vpack.c.b16 %v1489, %v1481
    %v1906 = vpack.c.b16 %v1498, %v1490
    %v1907 = vpack.c.b16 %v1499, %v1491
    %v1908 = vpack.c.b16 %v1500, %v1492
    %v1909 = vpack.c.b16 %v1501, %v1493
    %v1910 = vpack.c.b16 %v1502, %v1494
    %v1911 = vpack.c.b16 %v1503, %v1495
    %v1912 = vpack.c.b16 %v1504, %v1496
    %v1913 = vpack.c.b16 %v1505, %v1497
    %v1914 = vpack.c.b16 %v1514, %v1506
    %v1915 = vpack.c.b16 %v1515, %v1507
    %v1916 = vpack.c.b16 %v1516, %v1508
    %v1917 = vpack.c.b16 %v1517, %v1509
    %v1918 = vpack.c.b16 %v1518, %v1510
    %v1919 = vpack.c.b16 %v1519, %v1511
    %v1920 = vpack.c.b16 %v1520, %v1512
    %v1921 = vpack.c.b16 %v1521, %v1513
    %v1922 = vpack.c.b16 %v1530, %v1522
    %v1923 = vpack.c.b16 %v1531, %v1523
    %v1924 = vpack.c.b16 %v1532, %v1524
    %v1925 = vpack.c.b16 %v1533, %v1525
    %v1926 = vpack.c.b16 %v1534, %v1526
    %v1927 = vpack.c.b16 %v1535, %v1527
    %v1928 = vpack.c.b16 %v1536, %v1528
    %v1929 = vpack.c.b16 %v1537, %v1529
    %v1930 = vpack.c.b16 %v1546, %v1538
    %v1931 = vpack.c.b16 %v1547, %v1539
    %v1932 = vpack.c.b16 %v1548, %v1540
    %v1933 = vpack.c.b16 %v1549, %v1541
    %v1934 = vpack.c.b16 %v1550, %v1542
    %v1935 = vpack.c.b16 %v1551, %v1543
    %v1936 = vpack.c.b16 %v1552, %v1544
    %v1937 = vpack.c.b16 %v1553, %v1545
    %v1938 = vpack.c.b16 %v1562, %v1554
    %v1939 = vpack.c.b16 %v1563, %v1555
    %v1940 = vpack.c.b16 %v1564, %v1556
    %v1941 = vpack.c.b16 %v1565, %v1557
    %v1942 = vpack.c.b16 %v1566, %v1558
    %v1943 = vpack.c.b16 %v1567, %v1559
    %v1944 = vpack.c.b16 %v1568, %v1560
    %v1945 = vpack.c.b16 %v1569, %v1561
    %v1946 = vpack.c.b16 %v1578, %v1570
    %v1947 = vpack.c.b16 %v1579, %v1571
    %v1948 = vpack.c.b16 %v1580, %v1572
    %v1949 = vpack.c.b16 %v1581, %v1573
    %v1950 = vpack.c.b16 %v1582, %v1574
    %v1951 = vpack.c.b16 %v1583, %v1575
    %v1952 = vpack.c.b16 %v1584, %v1576
    %v1953 = vpack.c.b16 %v1585, %v1577
    %v1954 = vpack.c.b16 %v1594, %v1586
    %v1955 = vpack.c.b16 %v1595, %v1587
    %v1956 = vpack.c.b16 %v1596, %v1588
    %v1957 = vpack.c.b16 %v1597, %v1589
    %v1958 = vpack.c.b16 %v1598, %v1590
    %v1959 = vpack.c.b16 %v1599, %v1591
    %v1960 = vpack.c.b16 %v1600, %v1592
    %v1961 = vpack.c.b16 %v1601, %v1593
    %v1962 = vpack.c.b16 %v1610, %v1602
    %v1963 = vpack.c.b16 %v1611, %v1603
    %v1964 = vpack.c.b16 %v1612, %v1604
    %v1965 = vpack.c.b16 %v1613, %v1605
    %v1966 = vpack.c.b16 %v1614, %v1606
    %v1967 = vpack.c.b16 %v1615, %v1607
    %v1968 = vpack.c.b16 %v1616, %v1608
    %v1969 = vpack.c.b16 %v1617, %v1609
    %v1970 = vpack.c.b16 %v1626, %v1618
    %v1971 = vpack.c.b16 %v1627, %v1619
    %v1972 = vpack.c.b16 %v1628, %v1620
    %v1973 = vpack.c.b16 %v1629, %v1621
    %v1974 = vpack.c.b16 %v1630, %v1622
    %v1975 = vpack.c.b16 %v1631, %v1623
    %v1976 = vpack.c.b16 %v1632, %v1624
    %v1977 = vpack.c.b16 %v1633, %v1625
    %v1978 = vpack.c.b16 %v1642, %v1634
    %v1979 = vpack.c.b16 %v1643, %v1635
    %v1980 = vpack.c.b16 %v1644, %v1636
    %v1981 = vpack.c.b16 %v1645, %v1637
    %v1982 = vpack.c.b16 %v1646, %v1638
    %v1983 = vpack.c.b16 %v1647, %v1639
    %v1984 = vpack.c.b16 %v1648, %v1640
    %v1985 = vpack.c.b16 %v1649, %v1641
    %v1986 = vpack.c.b16 %v1658, %v1650
    %v1987 = vpack.c.b16 %v1659, %v1651
    %v1988 = vpack.c.b16 %v1660, %v1652
    %v1989 = vpack.c.b16 %v1661, %v1653
    %v1990 = vpack.c.b16 %v1662, %v1654
    %v1991 = vpack.c.b16 %v1663, %v1655
    %v1992 = vpack.c.b16 %v1664, %v1656
    %v1993 = vpack.c.b16 %v1665, %v1657
    %v1994 = vpack.c.b16 %v1674, %v1666
    %v1995 = vpack.c.b16 %v1675, %v1667
    %v1996 = vpack.c.b16 %v1676, %v1668
    %v1997 = vpack.c.b16 %v1677, %v1669
    %v1998 = vpack.c.b16 %v1678, %v1670
    %v1999 = vpack.c.b16 %v1679, %v1671
    %v2000 = vpack.c.b16 %v1680, %v1672
    %v2001 = vpack.c.b16 %v1681, %v1673
    %v2002 = vpack.c.b16 %v1690, %v1682
    %v2003 = vpack.c.b16 %v1691, %v1683
    %v2004 = vpack.c.b16 %v1692, %v1684
    %v2005 = vpack.c.b16 %v1693, %v1685
    %v2006 = vpack.c.b16 %v1694, %v1686
    %v2007 = vpack.c.b16 %v1695, %v1687
    %v2008 = vpack.c.b16 %v1696, %v1688
    %v2009 = vpack.c.b16 %v1697, %v1689
    %v2010 = vpack.c.b16 %v1706, %v1698
    %v2011 = vpack.c.b16 %v1707, %v1699
    %v2012 = vpack.c.b16 %v1708, %v1700
    %v2013 = vpack.c.b16 %v1709, %v1701
    %v2014 = vpack.c.b16 %v1710, %v1702
    %v2015 = vpack.c.b16 %v1711, %v1703
    %v2016 = vpack.c.b16 %v1712, %v1704
    %v2017 = vpack.c.b16 %v1713, %v1705
    %v2018 = vpack.c.b16 %v1722, %v1714
    %v2019 = vpack.c.b16 %v1723, %v1715
    %v2020 = vpack.c.b16 %v1724, %v1716
    %v2021 = vpack.c.b16 %v1725, %v1717
    %v2022 = vpack.c.b16 %v1726, %v1718
    %v2023 = vpack.c.b16 %v1727, %v1719
    %v2024 = vpack.c.b16 %v1728, %v1720
    %v2025 = vpack.c.b16 %v1729, %v1721
    %v2026 = vpack.c.b16 %v1738, %v1730
    %v2027 = vpack.c.b16 %v1739, %v1731
    %v2028 = vpack.c.b16 %v1740, %v1732
    %v2029 = vpack.c.b16 %v1741, %v1733
    %v2030 = vpack.c.b16 %v1742, %v1734
    %v2031 = vpack.c.b16 %v1743, %v1735
    %v2032 = vpack.c.b16 %v1744, %v1736
    %v2033 = vpack.c.b16 %v1745, %v1737
    %v2034 = vpack.c.b16 %v1754, %v1746
    %v2035 = vpack.c.b16 %v1755, %v1747
    %v2036 = vpack.c.b16 %v1756, %v1748
    %v2037 = vpack.c.b16 %v1757, %v1749
    %v2038 = vpack.c.b16 %v1758, %v1750
    %v2039 = vpack.c.b16 %v1759, %v1751
    %v2040 = vpack.c.b16 %v1760, %v1752
    %v2041 = vpack.c.b16 %v1761, %v1753
    %v2042 = vpack.c.b16 %v1770, %v1762
    %v2043 = vpack.c.b16 %v1771, %v1763
    %v2044 = vpack.c.b16 %v1772, %v1764
    %v2045 = vpack.c.b16 %v1773, %v1765
    %v2046 = vpack.c.b16 %v1774, %v1766
    %v2047 = vpack.c.b16 %v1775, %v1767
    %v2048 = vpack.c.b16 %v1776, %v1768
    %v2049 = vpack.c.b16 %v1777, %v1769
    %v2050 = vpack.c.b16 %v1786, %v1778
    %v2051 = vpack.c.b16 %v1787, %v1779
    %v2052 = vpack.c.b16 %v1788, %v1780
    %v2053 = vpack.c.b16 %v1789, %v1781
    %v2054 = vpack.c.b16 %v1790, %v1782
    %v2055 = vpack.c.b16 %v1791, %v1783
    %v2056 = vpack.c.b16 %v1792, %v1784
    %v2057 = vpack.c.b16 %v1793, %v1785
    %v2058 = vpack.c.b16 %v1802, %v1794
    %v2059 = vpack.c.b16 %v1803, %v1795
    %v2060 = vpack.c.b16 %v1804, %v1796
    %v2061 = vpack.c.b16 %v1805, %v1797
    %v2062 = vpack.c.b16 %v1806, %v1798
    %v2063 = vpack.c.b16 %v1807, %v1799
    %v2064 = vpack.c.b16 %v1808, %v1800
    %v2065 = vpack.c.b16 %v1809, %v1801
    %2322 = vmatpush.bf16.msra.mxu0 %v1866
    %2323 = vmatpush.bf16.msra.mxu0 %v1858
    %2324 = vmatpush.bf16.msra.mxu0 %v1850
    %2325 = vmatpush.bf16.msra.mxu0 %v1842
    %2326 = vmatpush.bf16.msra.mxu0 %v1834
    %2327 = vmatpush.bf16.msra.mxu0 %v1826
    %2328 = vmatpush.bf16.msra.mxu0 %v1818
    %2329 = vmatpush.bf16.msra.mxu0 %v1810
    %2330 = vmatmul.bf16.gmra.mxu0 %v764
    %v2331 = vpop.f32.mrf.mxu0
    %v2332 = vadd.f32 %v1026, %v2331
    %v2333 = vpop.f32.mrf.mxu0
    %2334 = vdwg.mxu0
    %2335 = vmatpush.bf16.msra.mxu0 %v1930
    %2336 = vmatpush.bf16.msra.mxu0 %v1922
    %2337 = vmatpush.bf16.msra.mxu0 %v1914
    %2338 = vmatpush.bf16.msra.mxu0 %v1906
    %2339 = vmatpush.bf16.msra.mxu0 %v1898
    %2340 = vmatpush.bf16.msra.mxu0 %v1890
    %2341 = vmatpush.bf16.msra.mxu0 %v1882
    %2342 = vmatpush.bf16.msra.mxu0 %v1874
    %2343 = vmatmul.bf16.gmra.mxu0 %v765
    %v2344 = vpop.f32.mrf.mxu0
    %v2345 = vadd.f32 %v2332, %v2344
    %v2346 = vpop.f32.mrf.mxu0
    %2347 = vdwg.mxu0
    %2348 = vmatpush.bf16.msra.mxu0 %v1994
    %2349 = vmatpush.bf16.msra.mxu0 %v1986
    %2350 = vmatpush.bf16.msra.mxu0 %v1978
    %2351 = vmatpush.bf16.msra.mxu0 %v1970
    %2352 = vmatpush.bf16.msra.mxu0 %v1962
    %2353 = vmatpush.bf16.msra.mxu0 %v1954
    %2354 = vmatpush.bf16.msra.mxu0 %v1946
    %2355 = vmatpush.bf16.msra.mxu0 %v1938
    %2356 = vmatmul.bf16.gmra.mxu0 %v766
    %v2357 = vpop.f32.mrf.mxu0
    %v2358 = vadd.f32 %v2345, %v2357
    %v2359 = vpop.f32.mrf.mxu0
    %2360 = vdwg.mxu0
    %2361 = vmatpush.bf16.msra.mxu0 %v2058
    %2362 = vmatpush.bf16.msra.mxu0 %v2050
    %2363 = vmatpush.bf16.msra.mxu0 %v2042
    %2364 = vmatpush.bf16.msra.mxu0 %v2034
    %2365 = vmatpush.bf16.msra.mxu0 %v2026
    %2366 = vmatpush.bf16.msra.mxu0 %v2018
    %2367 = vmatpush.bf16.msra.mxu0 %v2010
    %2368 = vmatpush.bf16.msra.mxu0 %v2002
    %2369 = vmatmul.bf16.gmra.mxu0 %v767
    %v2370 = vpop.f32.mrf.mxu0
    %v2371 = vadd.f32 %v2358, %v2370
    %v2372 = vpop.f32.mrf.mxu0
    %2373 = vdwg.mxu0
    %2374 = vmatpush.bf16.msra.mxu0 %v1867
    %2375 = vmatpush.bf16.msra.mxu0 %v1859
    %2376 = vmatpush.bf16.msra.mxu0 %v1851
    %2377 = vmatpush.bf16.msra.mxu0 %v1843
    %2378 = vmatpush.bf16.msra.mxu0 %v1835
    %2379 = vmatpush.bf16.msra.mxu0 %v1827
    %2380 = vmatpush.bf16.msra.mxu0 %v1819
    %2381 = vmatpush.bf16.msra.mxu0 %v1811
    %2382 = vmatmul.bf16.gmra.mxu0 %v764
    %v2383 = vpop.f32.mrf.mxu0
    %v2384 = vadd.f32 %v1027, %v2383
    %v2385 = vpop.f32.mrf.mxu0
    %2386 = vdwg.mxu0
    %2387 = vmatpush.bf16.msra.mxu0 %v1931
    %2388 = vmatpush.bf16.msra.mxu0 %v1923
    %2389 = vmatpush.bf16.msra.mxu0 %v1915
    %2390 = vmatpush.bf16.msra.mxu0 %v1907
    %2391 = vmatpush.bf16.msra.mxu0 %v1899
    %2392 = vmatpush.bf16.msra.mxu0 %v1891
    %2393 = vmatpush.bf16.msra.mxu0 %v1883
    %2394 = vmatpush.bf16.msra.mxu0 %v1875
    %2395 = vmatmul.bf16.gmra.mxu0 %v765
    %v2396 = vpop.f32.mrf.mxu0
    %v2397 = vadd.f32 %v2384, %v2396
    %v2398 = vpop.f32.mrf.mxu0
    %2399 = vdwg.mxu0
    %2400 = vmatpush.bf16.msra.mxu0 %v1995
    %2401 = vmatpush.bf16.msra.mxu0 %v1987
    %2402 = vmatpush.bf16.msra.mxu0 %v1979
    %2403 = vmatpush.bf16.msra.mxu0 %v1971
    %2404 = vmatpush.bf16.msra.mxu0 %v1963
    %2405 = vmatpush.bf16.msra.mxu0 %v1955
    %2406 = vmatpush.bf16.msra.mxu0 %v1947
    %2407 = vmatpush.bf16.msra.mxu0 %v1939
    %2408 = vmatmul.bf16.gmra.mxu0 %v766
    %v2409 = vpop.f32.mrf.mxu0
    %v2410 = vadd.f32 %v2397, %v2409
    %v2411 = vpop.f32.mrf.mxu0
    %2412 = vdwg.mxu0
    %2413 = vmatpush.bf16.msra.mxu0 %v2059
    %2414 = vmatpush.bf16.msra.mxu0 %v2051
    %2415 = vmatpush.bf16.msra.mxu0 %v2043
    %2416 = vmatpush.bf16.msra.mxu0 %v2035
    %2417 = vmatpush.bf16.msra.mxu0 %v2027
    %2418 = vmatpush.bf16.msra.mxu0 %v2019
    %2419 = vmatpush.bf16.msra.mxu0 %v2011
    %2420 = vmatpush.bf16.msra.mxu0 %v2003
    %2421 = vmatmul.bf16.gmra.mxu0 %v767
    %v2422 = vpop.f32.mrf.mxu0
    %v2423 = vadd.f32 %v2410, %v2422
    %v2424 = vpop.f32.mrf.mxu0
    %2425 = vdwg.mxu0
    %2426 = vmatpush.bf16.msra.mxu0 %v1868
    %2427 = vmatpush.bf16.msra.mxu0 %v1860
    %2428 = vmatpush.bf16.msra.mxu0 %v1852
    %2429 = vmatpush.bf16.msra.mxu0 %v1844
    %2430 = vmatpush.bf16.msra.mxu0 %v1836
    %2431 = vmatpush.bf16.msra.mxu0 %v1828
    %2432 = vmatpush.bf16.msra.mxu0 %v1820
    %2433 = vmatpush.bf16.msra.mxu0 %v1812
    %2434 = vmatmul.bf16.gmra.mxu0 %v764
    %v2435 = vpop.f32.mrf.mxu0
    %v2436 = vadd.f32 %v1028, %v2435
    %v2437 = vpop.f32.mrf.mxu0
    %2438 = vdwg.mxu0
    %2439 = vmatpush.bf16.msra.mxu0 %v1932
    %2440 = vmatpush.bf16.msra.mxu0 %v1924
    %2441 = vmatpush.bf16.msra.mxu0 %v1916
    %2442 = vmatpush.bf16.msra.mxu0 %v1908
    %2443 = vmatpush.bf16.msra.mxu0 %v1900
    %2444 = vmatpush.bf16.msra.mxu0 %v1892
    %2445 = vmatpush.bf16.msra.mxu0 %v1884
    %2446 = vmatpush.bf16.msra.mxu0 %v1876
    %2447 = vmatmul.bf16.gmra.mxu0 %v765
    %v2448 = vpop.f32.mrf.mxu0
    %v2449 = vadd.f32 %v2436, %v2448
    %v2450 = vpop.f32.mrf.mxu0
    %2451 = vdwg.mxu0
    %2452 = vmatpush.bf16.msra.mxu0 %v1996
    %2453 = vmatpush.bf16.msra.mxu0 %v1988
    %2454 = vmatpush.bf16.msra.mxu0 %v1980
    %2455 = vmatpush.bf16.msra.mxu0 %v1972
    %2456 = vmatpush.bf16.msra.mxu0 %v1964
    %2457 = vmatpush.bf16.msra.mxu0 %v1956
    %2458 = vmatpush.bf16.msra.mxu0 %v1948
    %2459 = vmatpush.bf16.msra.mxu0 %v1940
    %2460 = vmatmul.bf16.gmra.mxu0 %v766
    %v2461 = vpop.f32.mrf.mxu0
    %v2462 = vadd.f32 %v2449, %v2461
    %v2463 = vpop.f32.mrf.mxu0
    %2464 = vdwg.mxu0
    %2465 = vmatpush.bf16.msra.mxu0 %v2060
    %2466 = vmatpush.bf16.msra.mxu0 %v2052
    %2467 = vmatpush.bf16.msra.mxu0 %v2044
    %2468 = vmatpush.bf16.msra.mxu0 %v2036
    %2469 = vmatpush.bf16.msra.mxu0 %v2028
    %2470 = vmatpush.bf16.msra.mxu0 %v2020
    %2471 = vmatpush.bf16.msra.mxu0 %v2012
    %2472 = vmatpush.bf16.msra.mxu0 %v2004
    %2473 = vmatmul.bf16.gmra.mxu0 %v767
    %v2474 = vpop.f32.mrf.mxu0
    %v2475 = vadd.f32 %v2462, %v2474
    %v2476 = vpop.f32.mrf.mxu0
    %2477 = vdwg.mxu0
    %2478 = vmatpush.bf16.msra.mxu0 %v1869
    %2479 = vmatpush.bf16.msra.mxu0 %v1861
    %2480 = vmatpush.bf16.msra.mxu0 %v1853
    %2481 = vmatpush.bf16.msra.mxu0 %v1845
    %2482 = vmatpush.bf16.msra.mxu0 %v1837
    %2483 = vmatpush.bf16.msra.mxu0 %v1829
    %2484 = vmatpush.bf16.msra.mxu0 %v1821
    %2485 = vmatpush.bf16.msra.mxu0 %v1813
    %2486 = vmatmul.bf16.gmra.mxu0 %v764
    %v2487 = vpop.f32.mrf.mxu0
    %v2488 = vadd.f32 %v1029, %v2487
    %v2489 = vpop.f32.mrf.mxu0
    %2490 = vdwg.mxu0
    %2491 = vmatpush.bf16.msra.mxu0 %v1933
    %2492 = vmatpush.bf16.msra.mxu0 %v1925
    %2493 = vmatpush.bf16.msra.mxu0 %v1917
    %2494 = vmatpush.bf16.msra.mxu0 %v1909
    %2495 = vmatpush.bf16.msra.mxu0 %v1901
    %2496 = vmatpush.bf16.msra.mxu0 %v1893
    %2497 = vmatpush.bf16.msra.mxu0 %v1885
    %2498 = vmatpush.bf16.msra.mxu0 %v1877
    %2499 = vmatmul.bf16.gmra.mxu0 %v765
    %v2500 = vpop.f32.mrf.mxu0
    %v2501 = vadd.f32 %v2488, %v2500
    %v2502 = vpop.f32.mrf.mxu0
    %2503 = vdwg.mxu0
    %2504 = vmatpush.bf16.msra.mxu0 %v1997
    %2505 = vmatpush.bf16.msra.mxu0 %v1989
    %2506 = vmatpush.bf16.msra.mxu0 %v1981
    %2507 = vmatpush.bf16.msra.mxu0 %v1973
    %2508 = vmatpush.bf16.msra.mxu0 %v1965
    %2509 = vmatpush.bf16.msra.mxu0 %v1957
    %2510 = vmatpush.bf16.msra.mxu0 %v1949
    %2511 = vmatpush.bf16.msra.mxu0 %v1941
    %2512 = vmatmul.bf16.gmra.mxu0 %v766
    %v2513 = vpop.f32.mrf.mxu0
    %v2514 = vadd.f32 %v2501, %v2513
    %v2515 = vpop.f32.mrf.mxu0
    %2516 = vdwg.mxu0
    %2517 = vmatpush.bf16.msra.mxu0 %v2061
    %2518 = vmatpush.bf16.msra.mxu0 %v2053
    %2519 = vmatpush.bf16.msra.mxu0 %v2045
    %2520 = vmatpush.bf16.msra.mxu0 %v2037
    %2521 = vmatpush.bf16.msra.mxu0 %v2029
    %2522 = vmatpush.bf16.msra.mxu0 %v2021
    %2523 = vmatpush.bf16.msra.mxu0 %v2013
    %2524 = vmatpush.bf16.msra.mxu0 %v2005
    %2525 = vmatmul.bf16.gmra.mxu0 %v767
    %v2526 = vpop.f32.mrf.mxu0
    %v2527 = vadd.f32 %v2514, %v2526
    %v2528 = vpop.f32.mrf.mxu0
    %2529 = vdwg.mxu0
    %2530 = vmatpush.bf16.msra.mxu0 %v1870
    %2531 = vmatpush.bf16.msra.mxu0 %v1862
    %2532 = vmatpush.bf16.msra.mxu0 %v1854
    %2533 = vmatpush.bf16.msra.mxu0 %v1846
    %2534 = vmatpush.bf16.msra.mxu0 %v1838
    %2535 = vmatpush.bf16.msra.mxu0 %v1830
    %2536 = vmatpush.bf16.msra.mxu0 %v1822
    %2537 = vmatpush.bf16.msra.mxu0 %v1814
    %2538 = vmatmul.bf16.gmra.mxu0 %v764
    %v2539 = vpop.f32.mrf.mxu0
    %v2540 = vadd.f32 %v1030, %v2539
    %v2541 = vpop.f32.mrf.mxu0
    %2542 = vdwg.mxu0
    %2543 = vmatpush.bf16.msra.mxu0 %v1934
    %2544 = vmatpush.bf16.msra.mxu0 %v1926
    %2545 = vmatpush.bf16.msra.mxu0 %v1918
    %2546 = vmatpush.bf16.msra.mxu0 %v1910
    %2547 = vmatpush.bf16.msra.mxu0 %v1902
    %2548 = vmatpush.bf16.msra.mxu0 %v1894
    %2549 = vmatpush.bf16.msra.mxu0 %v1886
    %2550 = vmatpush.bf16.msra.mxu0 %v1878
    %2551 = vmatmul.bf16.gmra.mxu0 %v765
    %v2552 = vpop.f32.mrf.mxu0
    %v2553 = vadd.f32 %v2540, %v2552
    %v2554 = vpop.f32.mrf.mxu0
    %2555 = vdwg.mxu0
    %2556 = vmatpush.bf16.msra.mxu0 %v1998
    %2557 = vmatpush.bf16.msra.mxu0 %v1990
    %2558 = vmatpush.bf16.msra.mxu0 %v1982
    %2559 = vmatpush.bf16.msra.mxu0 %v1974
    %2560 = vmatpush.bf16.msra.mxu0 %v1966
    %2561 = vmatpush.bf16.msra.mxu0 %v1958
    %2562 = vmatpush.bf16.msra.mxu0 %v1950
    %2563 = vmatpush.bf16.msra.mxu0 %v1942
    %2564 = vmatmul.bf16.gmra.mxu0 %v766
    %v2565 = vpop.f32.mrf.mxu0
    %v2566 = vadd.f32 %v2553, %v2565
    %v2567 = vpop.f32.mrf.mxu0
    %2568 = vdwg.mxu0
    %2569 = vmatpush.bf16.msra.mxu0 %v2062
    %2570 = vmatpush.bf16.msra.mxu0 %v2054
    %2571 = vmatpush.bf16.msra.mxu0 %v2046
    %2572 = vmatpush.bf16.msra.mxu0 %v2038
    %2573 = vmatpush.bf16.msra.mxu0 %v2030
    %2574 = vmatpush.bf16.msra.mxu0 %v2022
    %2575 = vmatpush.bf16.msra.mxu0 %v2014
    %2576 = vmatpush.bf16.msra.mxu0 %v2006
    %2577 = vmatmul.bf16.gmra.mxu0 %v767
    %v2578 = vpop.f32.mrf.mxu0
    %v2579 = vadd.f32 %v2566, %v2578
    %v2580 = vpop.f32.mrf.mxu0
    %2581 = vdwg.mxu0
    %2582 = vmatpush.bf16.msra.mxu0 %v1871
    %2583 = vmatpush.bf16.msra.mxu0 %v1863
    %2584 = vmatpush.bf16.msra.mxu0 %v1855
    %2585 = vmatpush.bf16.msra.mxu0 %v1847
    %2586 = vmatpush.bf16.msra.mxu0 %v1839
    %2587 = vmatpush.bf16.msra.mxu0 %v1831
    %2588 = vmatpush.bf16.msra.mxu0 %v1823
    %2589 = vmatpush.bf16.msra.mxu0 %v1815
    %2590 = vmatmul.bf16.gmra.mxu0 %v764
    %v2591 = vpop.f32.mrf.mxu0
    %v2592 = vadd.f32 %v1031, %v2591
    %v2593 = vpop.f32.mrf.mxu0
    %2594 = vdwg.mxu0
    %2595 = vmatpush.bf16.msra.mxu0 %v1935
    %2596 = vmatpush.bf16.msra.mxu0 %v1927
    %2597 = vmatpush.bf16.msra.mxu0 %v1919
    %2598 = vmatpush.bf16.msra.mxu0 %v1911
    %2599 = vmatpush.bf16.msra.mxu0 %v1903
    %2600 = vmatpush.bf16.msra.mxu0 %v1895
    %2601 = vmatpush.bf16.msra.mxu0 %v1887
    %2602 = vmatpush.bf16.msra.mxu0 %v1879
    %2603 = vmatmul.bf16.gmra.mxu0 %v765
    %v2604 = vpop.f32.mrf.mxu0
    %v2605 = vadd.f32 %v2592, %v2604
    %v2606 = vpop.f32.mrf.mxu0
    %2607 = vdwg.mxu0
    %2608 = vmatpush.bf16.msra.mxu0 %v1999
    %2609 = vmatpush.bf16.msra.mxu0 %v1991
    %2610 = vmatpush.bf16.msra.mxu0 %v1983
    %2611 = vmatpush.bf16.msra.mxu0 %v1975
    %2612 = vmatpush.bf16.msra.mxu0 %v1967
    %2613 = vmatpush.bf16.msra.mxu0 %v1959
    %2614 = vmatpush.bf16.msra.mxu0 %v1951
    %2615 = vmatpush.bf16.msra.mxu0 %v1943
    %2616 = vmatmul.bf16.gmra.mxu0 %v766
    %v2617 = vpop.f32.mrf.mxu0
    %v2618 = vadd.f32 %v2605, %v2617
    %v2619 = vpop.f32.mrf.mxu0
    %2620 = vdwg.mxu0
    %2621 = vmatpush.bf16.msra.mxu0 %v2063
    %2622 = vmatpush.bf16.msra.mxu0 %v2055
    %2623 = vmatpush.bf16.msra.mxu0 %v2047
    %2624 = vmatpush.bf16.msra.mxu0 %v2039
    %2625 = vmatpush.bf16.msra.mxu0 %v2031
    %2626 = vmatpush.bf16.msra.mxu0 %v2023
    %2627 = vmatpush.bf16.msra.mxu0 %v2015
    %2628 = vmatpush.bf16.msra.mxu0 %v2007
    %2629 = vmatmul.bf16.gmra.mxu0 %v767
    %v2630 = vpop.f32.mrf.mxu0
    %v2631 = vadd.f32 %v2618, %v2630
    %v2632 = vpop.f32.mrf.mxu0
    %2633 = vdwg.mxu0
    %2634 = vmatpush.bf16.msra.mxu0 %v1872
    %2635 = vmatpush.bf16.msra.mxu0 %v1864
    %2636 = vmatpush.bf16.msra.mxu0 %v1856
    %2637 = vmatpush.bf16.msra.mxu0 %v1848
    %2638 = vmatpush.bf16.msra.mxu0 %v1840
    %2639 = vmatpush.bf16.msra.mxu0 %v1832
    %2640 = vmatpush.bf16.msra.mxu0 %v1824
    %2641 = vmatpush.bf16.msra.mxu0 %v1816
    %2642 = vmatmul.bf16.gmra.mxu0 %v764
    %v2643 = vpop.f32.mrf.mxu0
    %v2644 = vadd.f32 %v1032, %v2643
    %v2645 = vpop.f32.mrf.mxu0
    %2646 = vdwg.mxu0
    %2647 = vmatpush.bf16.msra.mxu0 %v1936
    %2648 = vmatpush.bf16.msra.mxu0 %v1928
    %2649 = vmatpush.bf16.msra.mxu0 %v1920
    %2650 = vmatpush.bf16.msra.mxu0 %v1912
    %2651 = vmatpush.bf16.msra.mxu0 %v1904
    %2652 = vmatpush.bf16.msra.mxu0 %v1896
    %2653 = vmatpush.bf16.msra.mxu0 %v1888
    %2654 = vmatpush.bf16.msra.mxu0 %v1880
    %2655 = vmatmul.bf16.gmra.mxu0 %v765
    %v2656 = vpop.f32.mrf.mxu0
    %v2657 = vadd.f32 %v2644, %v2656
    %v2658 = vpop.f32.mrf.mxu0
    %2659 = vdwg.mxu0
    %2660 = vmatpush.bf16.msra.mxu0 %v2000
    %2661 = vmatpush.bf16.msra.mxu0 %v1992
    %2662 = vmatpush.bf16.msra.mxu0 %v1984
    %2663 = vmatpush.bf16.msra.mxu0 %v1976
    %2664 = vmatpush.bf16.msra.mxu0 %v1968
    %2665 = vmatpush.bf16.msra.mxu0 %v1960
    %2666 = vmatpush.bf16.msra.mxu0 %v1952
    %2667 = vmatpush.bf16.msra.mxu0 %v1944
    %2668 = vmatmul.bf16.gmra.mxu0 %v766
    %v2669 = vpop.f32.mrf.mxu0
    %v2670 = vadd.f32 %v2657, %v2669
    %v2671 = vpop.f32.mrf.mxu0
    %2672 = vdwg.mxu0
    %2673 = vmatpush.bf16.msra.mxu0 %v2064
    %2674 = vmatpush.bf16.msra.mxu0 %v2056
    %2675 = vmatpush.bf16.msra.mxu0 %v2048
    %2676 = vmatpush.bf16.msra.mxu0 %v2040
    %2677 = vmatpush.bf16.msra.mxu0 %v2032
    %2678 = vmatpush.bf16.msra.mxu0 %v2024
    %2679 = vmatpush.bf16.msra.mxu0 %v2016
    %2680 = vmatpush.bf16.msra.mxu0 %v2008
    %2681 = vmatmul.bf16.gmra.mxu0 %v767
    %v2682 = vpop.f32.mrf.mxu0
    %v2683 = vadd.f32 %v2670, %v2682
    %v2684 = vpop.f32.mrf.mxu0
    %2685 = vdwg.mxu0
    %2686 = vmatpush.bf16.msra.mxu0 %v1873
    %2687 = vmatpush.bf16.msra.mxu0 %v1865
    %2688 = vmatpush.bf16.msra.mxu0 %v1857
    %2689 = vmatpush.bf16.msra.mxu0 %v1849
    %2690 = vmatpush.bf16.msra.mxu0 %v1841
    %2691 = vmatpush.bf16.msra.mxu0 %v1833
    %2692 = vmatpush.bf16.msra.mxu0 %v1825
    %2693 = vmatpush.bf16.msra.mxu0 %v1817
    %2694 = vmatmul.bf16.gmra.mxu0 %v764
    %v2695 = vpop.f32.mrf.mxu0
    %v2696 = vadd.f32 %v1033, %v2695
    %v2697 = vpop.f32.mrf.mxu0
    %2698 = vdwg.mxu0
    %2699 = vmatpush.bf16.msra.mxu0 %v1937
    %2700 = vmatpush.bf16.msra.mxu0 %v1929
    %2701 = vmatpush.bf16.msra.mxu0 %v1921
    %2702 = vmatpush.bf16.msra.mxu0 %v1913
    %2703 = vmatpush.bf16.msra.mxu0 %v1905
    %2704 = vmatpush.bf16.msra.mxu0 %v1897
    %2705 = vmatpush.bf16.msra.mxu0 %v1889
    %2706 = vmatpush.bf16.msra.mxu0 %v1881
    %2707 = vmatmul.bf16.gmra.mxu0 %v765
    %v2708 = vpop.f32.mrf.mxu0
    %v2709 = vadd.f32 %v2696, %v2708
    %v2710 = vpop.f32.mrf.mxu0
    %2711 = vdwg.mxu0
    %2712 = vmatpush.bf16.msra.mxu0 %v2001
    %2713 = vmatpush.bf16.msra.mxu0 %v1993
    %2714 = vmatpush.bf16.msra.mxu0 %v1985
    %2715 = vmatpush.bf16.msra.mxu0 %v1977
    %2716 = vmatpush.bf16.msra.mxu0 %v1969
    %2717 = vmatpush.bf16.msra.mxu0 %v1961
    %2718 = vmatpush.bf16.msra.mxu0 %v1953
    %2719 = vmatpush.bf16.msra.mxu0 %v1945
    %2720 = vmatmul.bf16.gmra.mxu0 %v766
    %v2721 = vpop.f32.mrf.mxu0
    %v2722 = vadd.f32 %v2709, %v2721
    %v2723 = vpop.f32.mrf.mxu0
    %2724 = vdwg.mxu0
    %2725 = vmatpush.bf16.msra.mxu0 %v2065
    %2726 = vmatpush.bf16.msra.mxu0 %v2057
    %2727 = vmatpush.bf16.msra.mxu0 %v2049
    %2728 = vmatpush.bf16.msra.mxu0 %v2041
    %2729 = vmatpush.bf16.msra.mxu0 %v2033
    %2730 = vmatpush.bf16.msra.mxu0 %v2025
    %2731 = vmatpush.bf16.msra.mxu0 %v2017
    %2732 = vmatpush.bf16.msra.mxu0 %v2009
    %2733 = vmatmul.bf16.gmra.mxu0 %v767
    %v2734 = vpop.f32.mrf.mxu0
    %v2735 = vadd.f32 %v2722, %v2734
    %v2736 = vpop.f32.mrf.mxu0
    %2737 = vdwg.mxu0
    %v2738 = vtanh.pop %v2371
    %v2739 = vtanh.pop %v2423
    %v2740 = vtanh.pop %v2475
    %v2741 = vtanh.pop %v2527
    %v2742 = vtanh.pop %v2579
    %v2743 = vtanh.pop %v2631
    %v2744 = vtanh.pop %v2683
    %v2745 = vtanh.pop %v2735
    %2746 = vst [vmem:[#allocation14] sm:$0xff] %v2738
    %2747 = vst [vmem:[#allocation14 + $0x8] sm:$0xff] %v2739
    %2748 = vst [vmem:[#allocation14 + $0x10] sm:$0xff] %v2740
    %2749 = vst [vmem:[#allocation14 + $0x18] sm:$0xff] %v2741
    %2750 = vst [vmem:[#allocation14 + $0x20] sm:$0xff] %v2742
    %2751 = vst [vmem:[#allocation14 + $0x28] sm:$0xff] %v2743
    %2752 = vst [vmem:[#allocation14 + $0x30] sm:$0xff] %v2744
    %2753 = vst [vmem:[#allocation14 + $0x38] sm:$0xff] %v2745
    // Predicated region
    $region58: #{tpu_custom_call.1} parent=1 // pred_check
      _
    $region59: #{tpu_custom_call.1} parent=1 // pred_check_branch
      %2755 = sbr.rel (0) target = $region61
    $region60: #{tpu_custom_call.1} parent=1 // pred_region
      %2757 = vsyncadd [#allocation4], 0
      %s2759 = sshll.u32 [#allocation14], 4
      %s2760 = int_to_ptr.vmem [resolvable:$true] %s2759
      %s2761 = sshll.u32 %s7, 4
      %s2762 = int_to_ptr.hbm [resolvable:$true] %s2761
      %2764 = dma.vmem_to_hbm [thread:$0]  %s2760, 1024, %s2762, [#allocation4]
    $region61: #{tpu_custom_call.1} parent=1 // pred_fallthru
      _
    // Predicated region
    $region62: #{tpu_custom_call.1} parent=1 // pred_check
      _
    $region63: #{tpu_custom_call.1} parent=1 // pred_check_branch
      %2766 = sbr.rel (0) target = $region65
    $region64: #{tpu_custom_call.1} parent=1 // pred_region
      %2768 = dma.done [#allocation4], 1024
    $region65: #{tpu_custom_call.1} parent=1 // pred_fallthru
      _
    %2769 = vsyncpa [#allocation3], 1
    %2770 = vsyncpa [#allocation6], 1
    %2771 = vsyncpa [#allocation9], 1
    %2772 = vsyncpa [#allocation12], 1
    %2773 = vsyncpa [#allocation4], 1

</llo_original>
